<compile_context>
chip_gen: v7x
topology: tpu7x:2x2x1
jax: 0.10.0
libtpu: 0.0.40
codegen_flags: <defaults>
</compile_context>

<pallas_src>
import functools

import jax
import jax.numpy as jnp
from jax.experimental import pallas as pl
from jax.experimental.pallas import tpu as pltpu


# ---------------------------------------------------------------------------
# Fused forward kernel (single invocation, everything resident in VMEM)
# ---------------------------------------------------------------------------

def fused_moe_kernel(xs_ref, wg_ref, bg_ref, w1_ref, b1_ref, sexp_ref, w2big_ref,
                     bmap_ref, wexp_ref, bogd_ref, gmat_ref, wq1_ref, qmask_ref,
                     qsum_ref, rrept_ref, bq1_ref, wq2_ref, bq2_ref, out_ref,
                     *, thr, max_out_rec, outer_recursive):
    """State layout (N = B*C, W = Dout + Din):
      state (N, W) = [ result (Dout lanes) | result @ wmap + bmap (Din lanes) ]
    Shapes:
      xs:(N,W)  wg:(W,E) bg:(1,E)  w1:(W,E*(H+2)) b1:(1,E*(H+2)) sexp:(E,E*(H+2))
      w2big:(E*(H+2), W)  bmap:(1,W)
      wexp:(N,W) bogd:(1,1) gmat:(N,N)
      wq1:(W,C*Qh) qmask:(N,C*Qh) qsum:(C*Qh,Qh) rrept:(B,N) bq1:(1,Qh)
      wq2:(Qh,A) bq2:(1,A)  out:(B,A)
    """
    f32 = jnp.float32
    bf16 = jnp.bfloat16

    def moe(state):
        # Gate-softmax MoE.  Only the input slot of `state` is read (wg/w1 are
        # zero-padded over the result slot).  Returns (N, W) = [out | out @ wmap]
        # with the gate-weighted expert bias folded in via the bias-carrier column.
        xb = state.astype(bf16)
        logits = jnp.dot(xb, wg_ref[...], preferred_element_type=f32) + bg_ref[...]
        logits = logits - jnp.max(logits, axis=-1, keepdims=True)
        ez = jnp.exp(logits)
        gate = ez / jnp.sum(ez, axis=-1, keepdims=True)          # exact reciprocal
        h = jnp.dot(xb, w1_ref[...], preferred_element_type=f32) + b1_ref[...]
        h = jnp.maximum(h, 0.0)                                  # bias-carrier col -> 1.0
        gexp = jnp.dot(gate.astype(bf16), sexp_ref[...], preferred_element_type=f32)
        hg = (h * gexp).astype(bf16)
        return jnp.dot(hg, w2big_ref[...], preferred_element_type=f32)

    def outer_gate(state):
        # 2-class softmax gate == sigmoid(z0 - z1); value broadcast to every row of
        # its batch group (N-row space, no rrep matmul).  Kept exact and in f32
        # because it feeds the hard recursion-threshold decision.
        pw = state * wexp_ref[...]                                       # (N, W)  VPU
        gs = jnp.dot(gmat_ref[...], pw, preferred_element_type=f32)      # group row-sum
        z = jnp.sum(gs, axis=-1, keepdims=True) + bogd_ref[...]          # (N, 1)  XLU
        return 1.0 / (1.0 + jnp.exp(-z))                                  # exact sigmoid

    # Initial MoE pass; state = [result | result @ wmap + bmap].
    state = moe(xs_ref[...]) + bmap_ref[...]

    if outer_recursive:
        inner = outer_gate(state)                                         # (N, 1)
        gate2 = (inner > thr).astype(f32)
        for _ in range(max_out_rec):                # static unroll, masked no-op after exit
            # Global early-exit: once sum(gate2)==0 nothing changes anymore (matches
            # the original while-loop condition; inactive rows never reactivate).
            do = (jnp.sum(gate2, keepdims=True) > 0.0).astype(f32)        # (1, 1)
            y = moe(state)                                                # [out | out@wmap]
            state = state + y * (inner * gate2 * do)   # pre-update inner/gate, per original
            inner_new = outer_gate(state)
            gate_new = (inner_new > 0.5).astype(f32)    # original hard-codes 0.5 in-loop
            inner = inner + do * (inner_new - inner)
            gate2 = gate2 + do * (gate_new - gate2)

    # Q1 head on the wide (channel-concatenated) result.
    # wq1 is zero-padded over the r_ slot, so `state` can be used directly.
    yq = jnp.dot(state.astype(bf16), wq1_ref[...], preferred_element_type=f32)  # (N, C*Qh)
    yq = yq * qmask_ref[...]                               # keep each row's own channel block
    t = jnp.dot(rrept_ref[...], yq, preferred_element_type=f32)                 # (B, C*Qh)
    hq = jnp.dot(t, qsum_ref[...], preferred_element_type=f32) + bq1_ref[...]   # (B, Qh)
    hq = jnp.maximum(hq, 0.0)
    out_ref[...] = jnp.dot(hq.astype(bf16), wq2_ref[...],
                           preferred_element_type=f32) + bq2_ref[...]            # (B, A)


# ---------------------------------------------------------------------------
# Parameter construction (original layouts) + host-side fused/padded layouts
# ---------------------------------------------------------------------------

def make_params(key, *, input_dim, hidden, output_dim, num_experts, channel,
                q_hidden, action_size):
    ks = jax.random.split(key, 8)
    s = 0.1
    return dict(
        # experts
        w1=(jax.random.normal(ks[0], (num_experts, input_dim, hidden)) * s).astype(jnp.float32),
        b1=jnp.zeros((num_experts, 1, hidden), jnp.float32),
        w2=(jax.random.normal(ks[1], (num_experts, hidden, output_dim)) * s).astype(jnp.float32),
        b2=jnp.zeros((num_experts, 1, output_dim), jnp.float32),
        # gating network (input_dim -> num_experts, softmax)
        wg=(jax.random.normal(ks[2], (input_dim, num_experts)) * s).astype(jnp.float32),
        bg=jnp.zeros((1, num_experts), jnp.float32),
        # outer recursive gating (output_dim*channel -> 2, softmax)
        wog=(jax.random.normal(ks[3], (output_dim * channel, 2)) * s).astype(jnp.float32),
        bog=jnp.zeros((1, 2), jnp.float32),
        # recursive mapping "Embedding" (output_dim -> input_dim)
        wmap=(jax.random.normal(ks[4], (output_dim, input_dim)) * s).astype(jnp.float32),
        bmap=jnp.zeros((1, input_dim), jnp.float32),
        # Q1 network (output_dim*channel -> q_hidden -> action_size)
        wq1=(jax.random.normal(ks[5], (output_dim * channel, q_hidden)) * s).astype(jnp.float32),
        bq1=jnp.zeros((1, q_hidden), jnp.float32),
        wq2=(jax.random.normal(ks[6], (q_hidden, action_size)) * s).astype(jnp.float32),
        bq2=jnp.zeros((1, action_size), jnp.float32),
    )


def prep_fused_params(p, *, B, C, E, H, Din, Dout, Qh):
    """One-time host-side layout change: all folding (b2, wmap, channel expansion,
    state-slot padding) happens in the weights, so the kernel never reshapes,
    slices or concatenates along the lane dimension."""
    f32, bf16 = jnp.float32, jnp.bfloat16
    N = B * C
    W = Dout + Din                 # combined state width: [result | r_]
    Hp = H + 2                     # +1 bias-carrier column, +1 pad -> E*Hp multiple of 8
    EH = E * Hp

    # --- experts fused along the hidden axis, bias folded via the carrier column.
    w1aug = jnp.zeros((Din, EH), f32)
    b1aug = jnp.zeros((1, EH), f32)
    w2aug = jnp.zeros((EH, Dout), f32)
    for e in range(E):
        s = e * Hp
        w1aug = w1aug.at[:, s:s + H].set(p['w1'][e])
        b1aug = b1aug.at[:, s:s + H].set(p['b1'][e][0])
        b1aug = b1aug.at[:, s + H].set(1.0)            # relu(0*x + 1) = 1  -> carries b2
        w2aug = w2aug.at[s:s + H, :].set(p['w2'][e])
        w2aug = w2aug.at[s + H, :].set(p['b2'][e][0])  # gate-weighted expert bias
    # gate expansion: gate (N,E) @ sexp -> (N, EH), gate[:,e] over expert e's block.
    sexp = jnp.repeat(jnp.eye(E, dtype=f32), Hp, axis=1)
    # fold the recursive mapping: each moe pass emits [out | out @ wmap].
    w2big = jnp.concatenate([w2aug, w2aug @ p['wmap']], axis=1)              # (EH, W)

    # zero-pad contraction dims so the combined state feeds the dots directly
    # (result slot rows are zeroed; only the r_/input slot contributes).
    def pad_rows(w):
        return jnp.concatenate([jnp.zeros((Dout, w.shape[1]), f32), w], axis=0)
    wg_pad = pad_rows(p['wg'])                                               # (W, E)
    w1aug_pad = pad_rows(w1aug)                                              # (W, EH)
    bmap_pad = jnp.concatenate([jnp.zeros((1, Dout), f32), p['bmap']], axis=1)  # (1, W)

    # outer gate: 2-class softmax -> sigmoid(z0 - z1); per-row channel-expanded weights.
    wogd = (p['wog'][:, 0] - p['wog'][:, 1]).reshape(C, Dout)
    bogd = (p['bog'][:, 0:1] - p['bog'][:, 1:2]).reshape(1, 1)
    wexp = jnp.tile(wogd, (B, 1))                                            # row b*C+c = wogd[c]
    wexp_pad = jnp.concatenate([wexp, jnp.zeros((N, Din), f32)], axis=1)     # (N, W)

    grp = jnp.arange(N) // C
    gmat = (grp[:, None] == grp[None, :]).astype(f32)                        # (N, N) group sum
    rrept = (jnp.arange(B)[:, None] == grp[None, :]).astype(f32)             # (B, N)

    # Q1 first layer: per-channel weights concatenated along output lanes + selection mask.
    wq1_3 = p['wq1'].reshape(C, Dout, Qh)
    wq1cat = jnp.transpose(wq1_3, (1, 0, 2)).reshape(Dout, C * Qh)           # [d, c*Qh+k]
    wq1cat_pad = jnp.concatenate([wq1cat, jnp.zeros((Din, C * Qh), f32)], axis=0)  # (W, C*Qh)
    cidx = (jnp.arange(N) % C)[:, None]
    kblk = (jnp.arange(C * Qh) // Qh)[None, :]
    qmask = (cidx == kblk).astype(f32)                                       # (N, C*Qh)
    qsum = jnp.tile(jnp.eye(Qh, dtype=f32), (C, 1))                          # (C*Qh, Qh)

    return dict(
        wg=wg_pad.astype(bf16), bg=p['bg'],
        w1=w1aug_pad.astype(bf16), b1=b1aug,
        sexp=sexp.astype(bf16), w2big=w2big.astype(bf16),
        bmap=bmap_pad, wexp=wexp_pad, bogd=bogd, gmat=gmat,
        wq1=wq1cat_pad.astype(bf16), qmask=qmask, qsum=qsum, rrept=rrept,
        bq1=p['bq1'], wq2=p['wq2'].astype(bf16), bq2=p['bq2'],
    )


# ---------------------------------------------------------------------------
# Forward wrapper: one pallas_call for the whole module
# ---------------------------------------------------------------------------

def mixture_of_experts_forward(data, fused, *, B, C, Din, Dout, A, thr,
                               max_out_rec, outer_recursive):
    N = B * C
    x2 = data.reshape(N, Din).astype(jnp.float32)
    # initial input placed in the state's r_/input slot (result slot zero)
    xs = jnp.concatenate([jnp.zeros((N, Dout), jnp.float32), x2], axis=1)
    kernel = functools.partial(fused_moe_kernel, thr=thr, max_out_rec=max_out_rec,
                               outer_recursive=outer_recursive)
    vmem = pl.BlockSpec(memory_space=pltpu.MemorySpace.VMEM)
    args = (xs, fused['wg'], fused['bg'], fused['w1'], fused['b1'], fused['sexp'],
            fused['w2big'], fused['bmap'], fused['wexp'], fused['bogd'],
            fused['gmat'], fused['wq1'], fused['qmask'], fused['qsum'],
            fused['rrept'], fused['bq1'], fused['wq2'], fused['bq2'])
    return pl.pallas_call(
        kernel,
        out_shape=jax.ShapeDtypeStruct((B, A), jnp.float32),
        in_specs=[vmem] * len(args),
        out_specs=vmem,
    )(*args)


# ---------------------------------------------------------------------------
# main
# ---------------------------------------------------------------------------

if __name__ == "__main__":
    B = 2                # batch
    CHANNEL = 4          # channel_wise_input -> channel
    INPUT_DIM = 32
    HIDDEN = 64          # expert hidden
    OUTPUT_DIM = 32      # experts_output_dim
    NUM_EXPERTS = 4
    Q_HIDDEN = 64
    ACTION_SIZE = 8
    OUTER_RECURSIVE = True
    OUTER_THRESHOLD = 0.3
    MAX_OUT_REC = 2

    key = jax.random.PRNGKey(0)
    k_data, k_params = jax.random.split(key)

    params = make_params(k_params, input_dim=INPUT_DIM, hidden=HIDDEN,
                         output_dim=OUTPUT_DIM, num_experts=NUM_EXPERTS,
                         channel=CHANNEL, q_hidden=Q_HIDDEN,
                         action_size=ACTION_SIZE)
    fused = prep_fused_params(params, B=B, C=CHANNEL, E=NUM_EXPERTS,
                              H=HIDDEN, Din=INPUT_DIM, Dout=OUTPUT_DIM,
                              Qh=Q_HIDDEN)

    data = jax.random.normal(k_data, (B, CHANNEL, INPUT_DIM), dtype=jnp.float32)

    fwd = jax.jit(functools.partial(
        mixture_of_experts_forward,
        B=B, C=CHANNEL, Din=INPUT_DIM, Dout=OUTPUT_DIM, A=ACTION_SIZE,
        thr=OUTER_THRESHOLD, max_out_rec=MAX_OUT_REC,
        outer_recursive=OUTER_RECURSIVE))

    values = fwd(data, fused)
    jax.block_until_ready(values)
    assert values.shape == (B, ACTION_SIZE)
    assert bool(jnp.all(jnp.isfinite(values)))
    print("KERNEL_OK")
</pallas_src>

<mosaic_0001>
module attributes {stable_mosaic.version = 11 : i64} {
  func.func @fused_moe_kernel(%arg0: memref<8x64xf32, #tpu.memory_space<vmem>>, %arg1: memref<64x4xbf16, #tpu.memory_space<vmem>>, %arg2: memref<1x4xf32, #tpu.memory_space<vmem>>, %arg3: memref<64x264xbf16, #tpu.memory_space<vmem>>, %arg4: memref<1x264xf32, #tpu.memory_space<vmem>>, %arg5: memref<4x264xbf16, #tpu.memory_space<vmem>>, %arg6: memref<264x64xbf16, #tpu.memory_space<vmem>>, %arg7: memref<1x64xf32, #tpu.memory_space<vmem>>, %arg8: memref<8x64xf32, #tpu.memory_space<vmem>>, %arg9: memref<1x1xf32, #tpu.memory_space<vmem>>, %arg10: memref<8x8xf32, #tpu.memory_space<vmem>>, %arg11: memref<64x256xbf16, #tpu.memory_space<vmem>>, %arg12: memref<8x256xf32, #tpu.memory_space<vmem>>, %arg13: memref<256x64xf32, #tpu.memory_space<vmem>>, %arg14: memref<2x8xf32, #tpu.memory_space<vmem>>, %arg15: memref<1x64xf32, #tpu.memory_space<vmem>>, %arg16: memref<64x8xbf16, #tpu.memory_space<vmem>>, %arg17: memref<1x8xf32, #tpu.memory_space<vmem>>, %arg18: memref<2x8xf32, #tpu.memory_space<vmem>>) attributes {dimension_semantics = [], scalar_prefetch = 0 : i64, scratch_operands = 0 : i64, tpu.core_type = #tpu.core_type<tc>} {
    %c0 = arith.constant 0 : index
    %c0_0 = arith.constant 0 : index
    %0 = vector.load %arg0[%c0, %c0_0] : memref<8x64xf32, #tpu.memory_space<vmem>>, vector<8x64xf32>
    %1 = arith.truncf %0 : vector<8x64xf32> to vector<8x64xbf16>
    %c0_1 = arith.constant 0 : index
    %c0_2 = arith.constant 0 : index
    %2 = vector.load %arg1[%c0_1, %c0_2] : memref<64x4xbf16, #tpu.memory_space<vmem>>, vector<64x4xbf16>
    %cst = arith.constant dense<0.000000e+00> : vector<8x4xf32>
    %3 = tpu.matmul %1, %2, %cst {dimension_numbers = #tpu.dot_dimension_numbers<[1], [0], [0], [1], [0, 0, 1, 1], [], []>} : vector<8x64xbf16>, vector<64x4xbf16>, vector<8x4xf32> -> vector<8x4xf32>
    %c0_3 = arith.constant 0 : index
    %c0_4 = arith.constant 0 : index
    %4 = vector.load %arg2[%c0_3, %c0_4] : memref<1x4xf32, #tpu.memory_space<vmem>>, vector<1x4xf32>
    %5 = vector.broadcast %4 : vector<1x4xf32> to vector<8x4xf32>
    %6 = arith.addf %3, %5 : vector<8x4xf32>
    %cst_5 = arith.constant dense<0xFF800000> : vector<8xf32>
    %7 = vector.multi_reduction <maximumf>, %6, %cst_5 [1] : vector<8x4xf32> to vector<8xf32>
    %8 = vector.shape_cast %7 : vector<8xf32> to vector<8x1xf32>
    %9 = vector.broadcast %8 : vector<8x1xf32> to vector<8x4xf32>
    %10 = arith.subf %6, %9 : vector<8x4xf32>
    %11 = math.exp %10 : vector<8x4xf32>
    %cst_6 = arith.constant dense<0.000000e+00> : vector<8xf32>
    %12 = vector.multi_reduction <add>, %11, %cst_6 [1] : vector<8x4xf32> to vector<8xf32>
    %13 = vector.shape_cast %12 : vector<8xf32> to vector<8x1xf32>
    %14 = vector.broadcast %13 : vector<8x1xf32> to vector<8x4xf32>
    %15 = arith.divf %11, %14 : vector<8x4xf32>
    %c0_7 = arith.constant 0 : index
    %c0_8 = arith.constant 0 : index
    %16 = vector.load %arg3[%c0_7, %c0_8] : memref<64x264xbf16, #tpu.memory_space<vmem>>, vector<64x264xbf16>
    %cst_9 = arith.constant dense<0.000000e+00> : vector<8x264xf32>
    %17 = tpu.matmul %1, %16, %cst_9 {dimension_numbers = #tpu.dot_dimension_numbers<[1], [0], [0], [1], [0, 0, 1, 1], [], []>} : vector<8x64xbf16>, vector<64x264xbf16>, vector<8x264xf32> -> vector<8x264xf32>
    %c0_10 = arith.constant 0 : index
    %c0_11 = arith.constant 0 : index
    %18 = vector.load %arg4[%c0_10, %c0_11] : memref<1x264xf32, #tpu.memory_space<vmem>>, vector<1x264xf32>
    %19 = vector.broadcast %18 : vector<1x264xf32> to vector<8x264xf32>
    %20 = arith.addf %17, %19 : vector<8x264xf32>
    %cst_12 = arith.constant 0.000000e+00 : f32
    %21 = vector.broadcast %cst_12 : f32 to vector<8x264xf32>
    %22 = arith.maximumf %20, %21 : vector<8x264xf32>
    %23 = arith.truncf %15 : vector<8x4xf32> to vector<8x4xbf16>
    %c0_13 = arith.constant 0 : index
    %c0_14 = arith.constant 0 : index
    %24 = vector.load %arg5[%c0_13, %c0_14] : memref<4x264xbf16, #tpu.memory_space<vmem>>, vector<4x264xbf16>
    %cst_15 = arith.constant dense<0.000000e+00> : vector<8x264xf32>
    %25 = tpu.matmul %23, %24, %cst_15 {dimension_numbers = #tpu.dot_dimension_numbers<[1], [0], [0], [1], [0, 0, 1, 1], [], []>} : vector<8x4xbf16>, vector<4x264xbf16>, vector<8x264xf32> -> vector<8x264xf32>
    %26 = arith.mulf %22, %25 : vector<8x264xf32>
    %27 = arith.truncf %26 : vector<8x264xf32> to vector<8x264xbf16>
    %c0_16 = arith.constant 0 : index
    %c0_17 = arith.constant 0 : index
    %28 = vector.load %arg6[%c0_16, %c0_17] : memref<264x64xbf16, #tpu.memory_space<vmem>>, vector<264x64xbf16>
    %cst_18 = arith.constant dense<0.000000e+00> : vector<8x64xf32>
    %29 = tpu.matmul %27, %28, %cst_18 {dimension_numbers = #tpu.dot_dimension_numbers<[1], [0], [0], [1], [0, 0, 1, 1], [], []>} : vector<8x264xbf16>, vector<264x64xbf16>, vector<8x64xf32> -> vector<8x64xf32>
    %c0_19 = arith.constant 0 : index
    %c0_20 = arith.constant 0 : index
    %30 = vector.load %arg7[%c0_19, %c0_20] : memref<1x64xf32, #tpu.memory_space<vmem>>, vector<1x64xf32>
    %31 = vector.broadcast %30 : vector<1x64xf32> to vector<8x64xf32>
    %32 = arith.addf %29, %31 : vector<8x64xf32>
    %c0_21 = arith.constant 0 : index
    %c0_22 = arith.constant 0 : index
    %33 = vector.load %arg8[%c0_21, %c0_22] : memref<8x64xf32, #tpu.memory_space<vmem>>, vector<8x64xf32>
    %34 = arith.mulf %32, %33 : vector<8x64xf32>
    %c0_23 = arith.constant 0 : index
    %c0_24 = arith.constant 0 : index
    %35 = vector.load %arg10[%c0_23, %c0_24] : memref<8x8xf32, #tpu.memory_space<vmem>>, vector<8x8xf32>
    %cst_25 = arith.constant dense<0.000000e+00> : vector<8x64xf32>
    %36 = tpu.matmul %35, %34, %cst_25 {dimension_numbers = #tpu.dot_dimension_numbers<[1], [0], [0], [1], [0, 0, 1, 1], [], []>} : vector<8x8xf32>, vector<8x64xf32>, vector<8x64xf32> -> vector<8x64xf32>
    %cst_26 = arith.constant dense<0.000000e+00> : vector<8xf32>
    %37 = vector.multi_reduction <add>, %36, %cst_26 [1] : vector<8x64xf32> to vector<8xf32>
    %38 = vector.shape_cast %37 : vector<8xf32> to vector<8x1xf32>
    %c0_27 = arith.constant 0 : index
    %c0_28 = arith.constant 0 : index
    %39 = vector.load %arg9[%c0_27, %c0_28] : memref<1x1xf32, #tpu.memory_space<vmem>>, vector<1x1xf32>
    %40 = vector.broadcast %39 : vector<1x1xf32> to vector<8x1xf32>
    %41 = arith.addf %38, %40 : vector<8x1xf32>
    %cst_29 = arith.constant 0.000000e+00 : f32
    %42 = vector.broadcast %cst_29 : f32 to vector<8x1xf32>
    %43 = arith.subf %42, %41 : vector<8x1xf32>
    %44 = math.exp %43 : vector<8x1xf32>
    %cst_30 = arith.constant 1.000000e+00 : f32
    %45 = vector.broadcast %cst_30 : f32 to vector<8x1xf32>
    %46 = arith.addf %45, %44 : vector<8x1xf32>
    %cst_31 = arith.constant 1.000000e+00 : f32
    %47 = vector.broadcast %cst_31 : f32 to vector<8x1xf32>
    %48 = arith.divf %47, %46 : vector<8x1xf32>
    %cst_32 = arith.constant 3.000000e-01 : f32
    %49 = vector.broadcast %cst_32 : f32 to vector<8x1xf32>
    %50 = arith.cmpf ogt, %48, %49 : vector<8x1xf32>
    %51 = arith.extui %50 : vector<8x1xi1> to vector<8x1xi32>
    %52 = arith.sitofp %51 : vector<8x1xi32> to vector<8x1xf32>
    %53 = vector.shape_cast %52 : vector<8x1xf32> to vector<1x8x1xf32>
    %cst_33 = arith.constant dense<0.000000e+00> : vector<1xf32>
    %54 = vector.multi_reduction <add>, %53, %cst_33 [1, 2] : vector<1x8x1xf32> to vector<1xf32>
    %55 = vector.shape_cast %54 : vector<1xf32> to vector<1x1x1xf32>
    %56 = vector.extract %55[0, 0, 0] : f32 from vector<1x1x1xf32>
    %57 = vector.broadcast %56 : f32 to vector<1x1xf32>
    %cst_34 = arith.constant 0.000000e+00 : f32
    %58 = vector.broadcast %cst_34 : f32 to vector<1x1xf32>
    %59 = arith.cmpf ogt, %57, %58 : vector<1x1xf32>
    %60 = arith.extui %59 : vector<1x1xi1> to vector<1x1xi32>
    %61 = arith.sitofp %60 : vector<1x1xi32> to vector<1x1xf32>
    %62 = arith.truncf %32 : vector<8x64xf32> to vector<8x64xbf16>
    %c0_35 = arith.constant 0 : index
    %c0_36 = arith.constant 0 : index
    %63 = vector.load %arg1[%c0_35, %c0_36] : memref<64x4xbf16, #tpu.memory_space<vmem>>, vector<64x4xbf16>
    %cst_37 = arith.constant dense<0.000000e+00> : vector<8x4xf32>
    %64 = tpu.matmul %62, %63, %cst_37 {dimension_numbers = #tpu.dot_dimension_numbers<[1], [0], [0], [1], [0, 0, 1, 1], [], []>} : vector<8x64xbf16>, vector<64x4xbf16>, vector<8x4xf32> -> vector<8x4xf32>
    %c0_38 = arith.constant 0 : index
    %c0_39 = arith.constant 0 : index
    %65 = vector.load %arg2[%c0_38, %c0_39] : memref<1x4xf32, #tpu.memory_space<vmem>>, vector<1x4xf32>
    %66 = vector.broadcast %65 : vector<1x4xf32> to vector<8x4xf32>
    %67 = arith.addf %64, %66 : vector<8x4xf32>
    %cst_40 = arith.constant dense<0xFF800000> : vector<8xf32>
    %68 = vector.multi_reduction <maximumf>, %67, %cst_40 [1] : vector<8x4xf32> to vector<8xf32>
    %69 = vector.shape_cast %68 : vector<8xf32> to vector<8x1xf32>
    %70 = vector.broadcast %69 : vector<8x1xf32> to vector<8x4xf32>
    %71 = arith.subf %67, %70 : vector<8x4xf32>
    %72 = math.exp %71 : vector<8x4xf32>
    %cst_41 = arith.constant dense<0.000000e+00> : vector<8xf32>
    %73 = vector.multi_reduction <add>, %72, %cst_41 [1] : vector<8x4xf32> to vector<8xf32>
    %74 = vector.shape_cast %73 : vector<8xf32> to vector<8x1xf32>
    %75 = vector.broadcast %74 : vector<8x1xf32> to vector<8x4xf32>
    %76 = arith.divf %72, %75 : vector<8x4xf32>
    %c0_42 = arith.constant 0 : index
    %c0_43 = arith.constant 0 : index
    %77 = vector.load %arg3[%c0_42, %c0_43] : memref<64x264xbf16, #tpu.memory_space<vmem>>, vector<64x264xbf16>
    %cst_44 = arith.constant dense<0.000000e+00> : vector<8x264xf32>
    %78 = tpu.matmul %62, %77, %cst_44 {dimension_numbers = #tpu.dot_dimension_numbers<[1], [0], [0], [1], [0, 0, 1, 1], [], []>} : vector<8x64xbf16>, vector<64x264xbf16>, vector<8x264xf32> -> vector<8x264xf32>
    %c0_45 = arith.constant 0 : index
    %c0_46 = arith.constant 0 : index
    %79 = vector.load %arg4[%c0_45, %c0_46] : memref<1x264xf32, #tpu.memory_space<vmem>>, vector<1x264xf32>
    %80 = vector.broadcast %79 : vector<1x264xf32> to vector<8x264xf32>
    %81 = arith.addf %78, %80 : vector<8x264xf32>
    %cst_47 = arith.constant 0.000000e+00 : f32
    %82 = vector.broadcast %cst_47 : f32 to vector<8x264xf32>
    %83 = arith.maximumf %81, %82 : vector<8x264xf32>
    %84 = arith.truncf %76 : vector<8x4xf32> to vector<8x4xbf16>
    %c0_48 = arith.constant 0 : index
    %c0_49 = arith.constant 0 : index
    %85 = vector.load %arg5[%c0_48, %c0_49] : memref<4x264xbf16, #tpu.memory_space<vmem>>, vector<4x264xbf16>
    %cst_50 = arith.constant dense<0.000000e+00> : vector<8x264xf32>
    %86 = tpu.matmul %84, %85, %cst_50 {dimension_numbers = #tpu.dot_dimension_numbers<[1], [0], [0], [1], [0, 0, 1, 1], [], []>} : vector<8x4xbf16>, vector<4x264xbf16>, vector<8x264xf32> -> vector<8x264xf32>
    %87 = arith.mulf %83, %86 : vector<8x264xf32>
    %88 = arith.truncf %87 : vector<8x264xf32> to vector<8x264xbf16>
    %c0_51 = arith.constant 0 : index
    %c0_52 = arith.constant 0 : index
    %89 = vector.load %arg6[%c0_51, %c0_52] : memref<264x64xbf16, #tpu.memory_space<vmem>>, vector<264x64xbf16>
    %cst_53 = arith.constant dense<0.000000e+00> : vector<8x64xf32>
    %90 = tpu.matmul %88, %89, %cst_53 {dimension_numbers = #tpu.dot_dimension_numbers<[1], [0], [0], [1], [0, 0, 1, 1], [], []>} : vector<8x264xbf16>, vector<264x64xbf16>, vector<8x64xf32> -> vector<8x64xf32>
    %91 = arith.mulf %48, %52 : vector<8x1xf32>
    %92 = vector.broadcast %61 : vector<1x1xf32> to vector<8x1xf32>
    %93 = arith.mulf %91, %92 : vector<8x1xf32>
    %94 = vector.broadcast %93 : vector<8x1xf32> to vector<8x64xf32>
    %95 = arith.mulf %90, %94 : vector<8x64xf32>
    %96 = arith.addf %32, %95 : vector<8x64xf32>
    %c0_54 = arith.constant 0 : index
    %c0_55 = arith.constant 0 : index
    %97 = vector.load %arg8[%c0_54, %c0_55] : memref<8x64xf32, #tpu.memory_space<vmem>>, vector<8x64xf32>
    %98 = arith.mulf %96, %97 : vector<8x64xf32>
    %c0_56 = arith.constant 0 : index
    %c0_57 = arith.constant 0 : index
    %99 = vector.load %arg10[%c0_56, %c0_57] : memref<8x8xf32, #tpu.memory_space<vmem>>, vector<8x8xf32>
    %cst_58 = arith.constant dense<0.000000e+00> : vector<8x64xf32>
    %100 = tpu.matmul %99, %98, %cst_58 {dimension_numbers = #tpu.dot_dimension_numbers<[1], [0], [0], [1], [0, 0, 1, 1], [], []>} : vector<8x8xf32>, vector<8x64xf32>, vector<8x64xf32> -> vector<8x64xf32>
    %cst_59 = arith.constant dense<0.000000e+00> : vector<8xf32>
    %101 = vector.multi_reduction <add>, %100, %cst_59 [1] : vector<8x64xf32> to vector<8xf32>
    %102 = vector.shape_cast %101 : vector<8xf32> to vector<8x1xf32>
    %c0_60 = arith.constant 0 : index
    %c0_61 = arith.constant 0 : index
    %103 = vector.load %arg9[%c0_60, %c0_61] : memref<1x1xf32, #tpu.memory_space<vmem>>, vector<1x1xf32>
    %104 = vector.broadcast %103 : vector<1x1xf32> to vector<8x1xf32>
    %105 = arith.addf %102, %104 : vector<8x1xf32>
    %cst_62 = arith.constant 0.000000e+00 : f32
    %106 = vector.broadcast %cst_62 : f32 to vector<8x1xf32>
    %107 = arith.subf %106, %105 : vector<8x1xf32>
    %108 = math.exp %107 : vector<8x1xf32>
    %cst_63 = arith.constant 1.000000e+00 : f32
    %109 = vector.broadcast %cst_63 : f32 to vector<8x1xf32>
    %110 = arith.addf %109, %108 : vector<8x1xf32>
    %cst_64 = arith.constant 1.000000e+00 : f32
    %111 = vector.broadcast %cst_64 : f32 to vector<8x1xf32>
    %112 = arith.divf %111, %110 : vector<8x1xf32>
    %cst_65 = arith.constant 5.000000e-01 : f32
    %113 = vector.broadcast %cst_65 : f32 to vector<8x1xf32>
    %114 = arith.cmpf ogt, %112, %113 : vector<8x1xf32>
    %115 = arith.extui %114 : vector<8x1xi1> to vector<8x1xi32>
    %116 = arith.sitofp %115 : vector<8x1xi32> to vector<8x1xf32>
    %117 = arith.subf %112, %48 : vector<8x1xf32>
    %118 = vector.broadcast %61 : vector<1x1xf32> to vector<8x1xf32>
    %119 = arith.mulf %118, %117 : vector<8x1xf32>
    %120 = arith.addf %48, %119 : vector<8x1xf32>
    %121 = arith.subf %116, %52 : vector<8x1xf32>
    %122 = vector.broadcast %61 : vector<1x1xf32> to vector<8x1xf32>
    %123 = arith.mulf %122, %121 : vector<8x1xf32>
    %124 = arith.addf %52, %123 : vector<8x1xf32>
    %125 = vector.shape_cast %124 : vector<8x1xf32> to vector<1x8x1xf32>
    %cst_66 = arith.constant dense<0.000000e+00> : vector<1xf32>
    %126 = vector.multi_reduction <add>, %125, %cst_66 [1, 2] : vector<1x8x1xf32> to vector<1xf32>
    %127 = vector.shape_cast %126 : vector<1xf32> to vector<1x1x1xf32>
    %128 = vector.extract %127[0, 0, 0] : f32 from vector<1x1x1xf32>
    %129 = vector.broadcast %128 : f32 to vector<1x1xf32>
    %cst_67 = arith.constant 0.000000e+00 : f32
    %130 = vector.broadcast %cst_67 : f32 to vector<1x1xf32>
    %131 = arith.cmpf ogt, %129, %130 : vector<1x1xf32>
    %132 = arith.extui %131 : vector<1x1xi1> to vector<1x1xi32>
    %133 = arith.sitofp %132 : vector<1x1xi32> to vector<1x1xf32>
    %134 = arith.truncf %96 : vector<8x64xf32> to vector<8x64xbf16>
    %c0_68 = arith.constant 0 : index
    %c0_69 = arith.constant 0 : index
    %135 = vector.load %arg1[%c0_68, %c0_69] : memref<64x4xbf16, #tpu.memory_space<vmem>>, vector<64x4xbf16>
    %cst_70 = arith.constant dense<0.000000e+00> : vector<8x4xf32>
    %136 = tpu.matmul %134, %135, %cst_70 {dimension_numbers = #tpu.dot_dimension_numbers<[1], [0], [0], [1], [0, 0, 1, 1], [], []>} : vector<8x64xbf16>, vector<64x4xbf16>, vector<8x4xf32> -> vector<8x4xf32>
    %c0_71 = arith.constant 0 : index
    %c0_72 = arith.constant 0 : index
    %137 = vector.load %arg2[%c0_71, %c0_72] : memref<1x4xf32, #tpu.memory_space<vmem>>, vector<1x4xf32>
    %138 = vector.broadcast %137 : vector<1x4xf32> to vector<8x4xf32>
    %139 = arith.addf %136, %138 : vector<8x4xf32>
    %cst_73 = arith.constant dense<0xFF800000> : vector<8xf32>
    %140 = vector.multi_reduction <maximumf>, %139, %cst_73 [1] : vector<8x4xf32> to vector<8xf32>
    %141 = vector.shape_cast %140 : vector<8xf32> to vector<8x1xf32>
    %142 = vector.broadcast %141 : vector<8x1xf32> to vector<8x4xf32>
    %143 = arith.subf %139, %142 : vector<8x4xf32>
    %144 = math.exp %143 : vector<8x4xf32>
    %cst_74 = arith.constant dense<0.000000e+00> : vector<8xf32>
    %145 = vector.multi_reduction <add>, %144, %cst_74 [1] : vector<8x4xf32> to vector<8xf32>
    %146 = vector.shape_cast %145 : vector<8xf32> to vector<8x1xf32>
    %147 = vector.broadcast %146 : vector<8x1xf32> to vector<8x4xf32>
    %148 = arith.divf %144, %147 : vector<8x4xf32>
    %c0_75 = arith.constant 0 : index
    %c0_76 = arith.constant 0 : index
    %149 = vector.load %arg3[%c0_75, %c0_76] : memref<64x264xbf16, #tpu.memory_space<vmem>>, vector<64x264xbf16>
    %cst_77 = arith.constant dense<0.000000e+00> : vector<8x264xf32>
    %150 = tpu.matmul %134, %149, %cst_77 {dimension_numbers = #tpu.dot_dimension_numbers<[1], [0], [0], [1], [0, 0, 1, 1], [], []>} : vector<8x64xbf16>, vector<64x264xbf16>, vector<8x264xf32> -> vector<8x264xf32>
    %c0_78 = arith.constant 0 : index
    %c0_79 = arith.constant 0 : index
    %151 = vector.load %arg4[%c0_78, %c0_79] : memref<1x264xf32, #tpu.memory_space<vmem>>, vector<1x264xf32>
    %152 = vector.broadcast %151 : vector<1x264xf32> to vector<8x264xf32>
    %153 = arith.addf %150, %152 : vector<8x264xf32>
    %cst_80 = arith.constant 0.000000e+00 : f32
    %154 = vector.broadcast %cst_80 : f32 to vector<8x264xf32>
    %155 = arith.maximumf %153, %154 : vector<8x264xf32>
    %156 = arith.truncf %148 : vector<8x4xf32> to vector<8x4xbf16>
    %c0_81 = arith.constant 0 : index
    %c0_82 = arith.constant 0 : index
    %157 = vector.load %arg5[%c0_81, %c0_82] : memref<4x264xbf16, #tpu.memory_space<vmem>>, vector<4x264xbf16>
    %cst_83 = arith.constant dense<0.000000e+00> : vector<8x264xf32>
    %158 = tpu.matmul %156, %157, %cst_83 {dimension_numbers = #tpu.dot_dimension_numbers<[1], [0], [0], [1], [0, 0, 1, 1], [], []>} : vector<8x4xbf16>, vector<4x264xbf16>, vector<8x264xf32> -> vector<8x264xf32>
    %159 = arith.mulf %155, %158 : vector<8x264xf32>
    %160 = arith.truncf %159 : vector<8x264xf32> to vector<8x264xbf16>
    %c0_84 = arith.constant 0 : index
    %c0_85 = arith.constant 0 : index
    %161 = vector.load %arg6[%c0_84, %c0_85] : memref<264x64xbf16, #tpu.memory_space<vmem>>, vector<264x64xbf16>
    %cst_86 = arith.constant dense<0.000000e+00> : vector<8x64xf32>
    %162 = tpu.matmul %160, %161, %cst_86 {dimension_numbers = #tpu.dot_dimension_numbers<[1], [0], [0], [1], [0, 0, 1, 1], [], []>} : vector<8x264xbf16>, vector<264x64xbf16>, vector<8x64xf32> -> vector<8x64xf32>
    %163 = arith.mulf %120, %124 : vector<8x1xf32>
    %164 = vector.broadcast %133 : vector<1x1xf32> to vector<8x1xf32>
    %165 = arith.mulf %163, %164 : vector<8x1xf32>
    %166 = vector.broadcast %165 : vector<8x1xf32> to vector<8x64xf32>
    %167 = arith.mulf %162, %166 : vector<8x64xf32>
    %168 = arith.addf %96, %167 : vector<8x64xf32>
    %169 = arith.truncf %168 : vector<8x64xf32> to vector<8x64xbf16>
    %c0_87 = arith.constant 0 : index
    %c0_88 = arith.constant 0 : index
    %170 = vector.load %arg11[%c0_87, %c0_88] : memref<64x256xbf16, #tpu.memory_space<vmem>>, vector<64x256xbf16>
    %cst_89 = arith.constant dense<0.000000e+00> : vector<8x256xf32>
    %171 = tpu.matmul %169, %170, %cst_89 {dimension_numbers = #tpu.dot_dimension_numbers<[1], [0], [0], [1], [0, 0, 1, 1], [], []>} : vector<8x64xbf16>, vector<64x256xbf16>, vector<8x256xf32> -> vector<8x256xf32>
    %c0_90 = arith.constant 0 : index
    %c0_91 = arith.constant 0 : index
    %172 = vector.load %arg12[%c0_90, %c0_91] : memref<8x256xf32, #tpu.memory_space<vmem>>, vector<8x256xf32>
    %173 = arith.mulf %171, %172 : vector<8x256xf32>
    %c0_92 = arith.constant 0 : index
    %c0_93 = arith.constant 0 : index
    %174 = vector.load %arg14[%c0_92, %c0_93] : memref<2x8xf32, #tpu.memory_space<vmem>>, vector<2x8xf32>
    %cst_94 = arith.constant dense<0.000000e+00> : vector<2x256xf32>
    %175 = tpu.matmul %174, %173, %cst_94 {dimension_numbers = #tpu.dot_dimension_numbers<[1], [0], [0], [1], [0, 0, 1, 1], [], []>} : vector<2x8xf32>, vector<8x256xf32>, vector<2x256xf32> -> vector<2x256xf32>
    %c0_95 = arith.constant 0 : index
    %c0_96 = arith.constant 0 : index
    %176 = vector.load %arg13[%c0_95, %c0_96] : memref<256x64xf32, #tpu.memory_space<vmem>>, vector<256x64xf32>
    %cst_97 = arith.constant dense<0.000000e+00> : vector<2x64xf32>
    %177 = tpu.matmul %175, %176, %cst_97 {dimension_numbers = #tpu.dot_dimension_numbers<[1], [0], [0], [1], [0, 0, 1, 1], [], []>} : vector<2x256xf32>, vector<256x64xf32>, vector<2x64xf32> -> vector<2x64xf32>
    %c0_98 = arith.constant 0 : index
    %c0_99 = arith.constant 0 : index
    %178 = vector.load %arg15[%c0_98, %c0_99] : memref<1x64xf32, #tpu.memory_space<vmem>>, vector<1x64xf32>
    %179 = vector.broadcast %178 : vector<1x64xf32> to vector<2x64xf32>
    %180 = arith.addf %177, %179 : vector<2x64xf32>
    %cst_100 = arith.constant 0.000000e+00 : f32
    %181 = vector.broadcast %cst_100 : f32 to vector<2x64xf32>
    %182 = arith.maximumf %180, %181 : vector<2x64xf32>
    %183 = arith.truncf %182 : vector<2x64xf32> to vector<2x64xbf16>
    %c0_101 = arith.constant 0 : index
    %c0_102 = arith.constant 0 : index
    %184 = vector.load %arg16[%c0_101, %c0_102] : memref<64x8xbf16, #tpu.memory_space<vmem>>, vector<64x8xbf16>
    %cst_103 = arith.constant dense<0.000000e+00> : vector<2x8xf32>
    %185 = tpu.matmul %183, %184, %cst_103 {dimension_numbers = #tpu.dot_dimension_numbers<[1], [0], [0], [1], [0, 0, 1, 1], [], []>} : vector<2x64xbf16>, vector<64x8xbf16>, vector<2x8xf32> -> vector<2x8xf32>
    %c0_104 = arith.constant 0 : index
    %c0_105 = arith.constant 0 : index
    %186 = vector.load %arg17[%c0_104, %c0_105] : memref<1x8xf32, #tpu.memory_space<vmem>>, vector<1x8xf32>
    %187 = vector.broadcast %186 : vector<1x8xf32> to vector<2x8xf32>
    %188 = arith.addf %185, %187 : vector<2x8xf32>
    %c0_106 = arith.constant 0 : index
    %c0_107 = arith.constant 0 : index
    %189 = vector.load %arg18[%c0_106, %c0_107] : memref<2x8xf32, #tpu.memory_space<vmem>>, vector<2x8xf32>
    tpu.vector_store %arg18[%c0_106, %c0_107], %188 {strides = array<i32>} : memref<2x8xf32, #tpu.memory_space<vmem>>, vector<2x8xf32>,
    return
  }
}

</mosaic_0001>

<llo_original>
// kernel: mixture_of_experts_forward.1
$region0: #{mixture_of_experts_forward.1}
  #allocation0 [shape = 'u32[]', space=smem, size = 0x4, offset = 0x4, fixed_abs, tag = 'smem constant byte address 0x4 - core index']
  #allocation1 [shape = 'u32[144,128]{1,0:T(1,128)}', space=vmem, size = 0x12000, scoped, tag = 'internal scratch']
  #allocation2 [shape = 'f32[1,1]{1,0:T(1,128)S(1)}', space=vmem, size = 0x200, scoped, tag = 'scoped memory for mixture_of_experts_forward.1']
  %s0 = inlined_call_operand.vmem [shape: f32[8,64], index: 0, kind: input, shape index: {}]
  %s1 = inlined_call_operand.vmem [shape: bf16[64,4], index: 1, kind: input, shape index: {}]
  %s2 = inlined_call_operand.vmem [shape: f32[1,4], index: 2, kind: input, shape index: {}]
  %s3 = inlined_call_operand.vmem [shape: bf16[64,264], index: 3, kind: input, shape index: {}]
  %s4 = inlined_call_operand.vmem [shape: f32[1,264], index: 4, kind: input, shape index: {}]
  %s5 = inlined_call_operand.vmem [shape: bf16[4,264], index: 5, kind: input, shape index: {}]
  %s6 = inlined_call_operand.vmem [shape: bf16[264,64], index: 6, kind: input, shape index: {}]
  %s7 = inlined_call_operand.vmem [shape: f32[1,64], index: 7, kind: input, shape index: {}]
  %s8 = inlined_call_operand.vmem [shape: f32[8,64], index: 8, kind: input, shape index: {}]
  %s9 = inlined_call_operand.<no memory space> [shape: f32[1,1], index: 9, kind: input, shape index: {}]
  %s10 = inlined_call_operand.vmem [shape: f32[8,8], index: 10, kind: input, shape index: {}]
  %s11 = inlined_call_operand.vmem [shape: bf16[64,256], index: 11, kind: input, shape index: {}]
  %s12 = inlined_call_operand.vmem [shape: f32[8,256], index: 12, kind: input, shape index: {}]
  %s13 = inlined_call_operand.vmem [shape: f32[256,64], index: 13, kind: input, shape index: {}]
  %s14 = inlined_call_operand.vmem [shape: f32[2,8], index: 14, kind: input, shape index: {}]
  %s15 = inlined_call_operand.vmem [shape: f32[1,64], index: 15, kind: input, shape index: {}]
  %s16 = inlined_call_operand.vmem [shape: bf16[64,8], index: 16, kind: input, shape index: {}]
  %s17 = inlined_call_operand.vmem [shape: f32[1,8], index: 17, kind: input, shape index: {}]
  %s18 = inlined_call_operand.hbm [shape: f32[2,8], index: 18, kind: output, shape index: {}]
  %s19 = sld [smem:[#allocation0]]
  $region82: #{mixture_of_experts_forward.1} parent=0
    _
  %s21 = ssub.s32 1, %s19
  %s22 = scalar_select 0, %s21, %s19
  %v23 = vstv %s9
  %24 = vst [vmem:[#allocation2] sm:$0x1] %v23
  $region1: #{mixture_of_experts_forward.1} parent=0
    #allocation3 [shape = 'u8[1024]{0}', space=vmem, size = 0x400, scoped, tag = 'output window, operand 0, single buffered']
    #allocation4 [shape = 's32[1]{0}', space=sflag, size = 0x4, scoped, tag = 'scoped memory for mixture_of_experts_forward.1']
    %25 = vsyncpa [#allocation4], 0
    // Predicated region
    $region2: #{mixture_of_experts_forward.1} parent=1 // pred_check
      _
    $region3: #{mixture_of_experts_forward.1} parent=1 // pred_check_branch
      %27 = sbr.rel (0) target = $region5
    $region4: #{mixture_of_experts_forward.1} parent=1 // pred_region
      _
    $region5: #{mixture_of_experts_forward.1} parent=1 // pred_fallthru
      _
    // Predicated region
    $region6: #{mixture_of_experts_forward.1} parent=1 // pred_check
      _
    $region7: #{mixture_of_experts_forward.1} parent=1 // pred_check_branch
      %29 = sbr.rel (0) target = $region9
    $region8: #{mixture_of_experts_forward.1} parent=1 // pred_region
      _
    $region9: #{mixture_of_experts_forward.1} parent=1 // pred_fallthru
      _
    // Predicated region
    $region10: #{mixture_of_experts_forward.1} parent=1 // pred_check
      _
    $region11: #{mixture_of_experts_forward.1} parent=1 // pred_check_branch
      %31 = sbr.rel (0) target = $region13
    $region12: #{mixture_of_experts_forward.1} parent=1 // pred_region
      _
    $region13: #{mixture_of_experts_forward.1} parent=1 // pred_fallthru
      _
    // Predicated region
    $region14: #{mixture_of_experts_forward.1} parent=1 // pred_check
      _
    $region15: #{mixture_of_experts_forward.1} parent=1 // pred_check_branch
      %33 = sbr.rel (0) target = $region17
    $region16: #{mixture_of_experts_forward.1} parent=1 // pred_region
      _
    $region17: #{mixture_of_experts_forward.1} parent=1 // pred_fallthru
      _
    // Predicated region
    $region18: #{mixture_of_experts_forward.1} parent=1 // pred_check
      _
    $region19: #{mixture_of_experts_forward.1} parent=1 // pred_check_branch
      %35 = sbr.rel (0) target = $region21
    $region20: #{mixture_of_experts_forward.1} parent=1 // pred_region
      _
    $region21: #{mixture_of_experts_forward.1} parent=1 // pred_fallthru
      _
    // Predicated region
    $region22: #{mixture_of_experts_forward.1} parent=1 // pred_check
      _
    $region23: #{mixture_of_experts_forward.1} parent=1 // pred_check_branch
      %37 = sbr.rel (0) target = $region25
    $region24: #{mixture_of_experts_forward.1} parent=1 // pred_region
      _
    $region25: #{mixture_of_experts_forward.1} parent=1 // pred_fallthru
      _
    // Predicated region
    $region26: #{mixture_of_experts_forward.1} parent=1 // pred_check
      _
    $region27: #{mixture_of_experts_forward.1} parent=1 // pred_check_branch
      %39 = sbr.rel (0) target = $region29
    $region28: #{mixture_of_experts_forward.1} parent=1 // pred_region
      _
    $region29: #{mixture_of_experts_forward.1} parent=1 // pred_fallthru
      _
    // Predicated region
    $region30: #{mixture_of_experts_forward.1} parent=1 // pred_check
      _
    $region31: #{mixture_of_experts_forward.1} parent=1 // pred_check_branch
      %41 = sbr.rel (0) target = $region33
    $region32: #{mixture_of_experts_forward.1} parent=1 // pred_region
      _
    $region33: #{mixture_of_experts_forward.1} parent=1 // pred_fallthru
      _
    // Predicated region
    $region34: #{mixture_of_experts_forward.1} parent=1 // pred_check
      _
    $region35: #{mixture_of_experts_forward.1} parent=1 // pred_check_branch
      %43 = sbr.rel (0) target = $region37
    $region36: #{mixture_of_experts_forward.1} parent=1 // pred_region
      _
    $region37: #{mixture_of_experts_forward.1} parent=1 // pred_fallthru
      _
    // Predicated region
    $region38: #{mixture_of_experts_forward.1} parent=1 // pred_check
      _
    $region39: #{mixture_of_experts_forward.1} parent=1 // pred_check_branch
      %45 = sbr.rel (0) target = $region41
    $region40: #{mixture_of_experts_forward.1} parent=1 // pred_region
      _
    $region41: #{mixture_of_experts_forward.1} parent=1 // pred_fallthru
      _
    // Predicated region
    $region42: #{mixture_of_experts_forward.1} parent=1 // pred_check
      _
    $region43: #{mixture_of_experts_forward.1} parent=1 // pred_check_branch
      %47 = sbr.rel (0) target = $region45
    $region44: #{mixture_of_experts_forward.1} parent=1 // pred_region
      _
    $region45: #{mixture_of_experts_forward.1} parent=1 // pred_fallthru
      _
    // Predicated region
    $region46: #{mixture_of_experts_forward.1} parent=1 // pred_check
      _
    $region47: #{mixture_of_experts_forward.1} parent=1 // pred_check_branch
      %49 = sbr.rel (0) target = $region49
    $region48: #{mixture_of_experts_forward.1} parent=1 // pred_region
      _
    $region49: #{mixture_of_experts_forward.1} parent=1 // pred_fallthru
      _
    // Predicated region
    $region50: #{mixture_of_experts_forward.1} parent=1 // pred_check
      _
    $region51: #{mixture_of_experts_forward.1} parent=1 // pred_check_branch
      %51 = sbr.rel (0) target = $region53
    $region52: #{mixture_of_experts_forward.1} parent=1 // pred_region
      _
    $region53: #{mixture_of_experts_forward.1} parent=1 // pred_fallthru
      _
    // Predicated region
    $region54: #{mixture_of_experts_forward.1} parent=1 // pred_check
      _
    $region55: #{mixture_of_experts_forward.1} parent=1 // pred_check_branch
      %53 = sbr.rel (0) target = $region57
    $region56: #{mixture_of_experts_forward.1} parent=1 // pred_region
      _
    $region57: #{mixture_of_experts_forward.1} parent=1 // pred_fallthru
      _
    // Predicated region
    $region58: #{mixture_of_experts_forward.1} parent=1 // pred_check
      _
    $region59: #{mixture_of_experts_forward.1} parent=1 // pred_check_branch
      %55 = sbr.rel (0) target = $region61
    $region60: #{mixture_of_experts_forward.1} parent=1 // pred_region
      _
    $region61: #{mixture_of_experts_forward.1} parent=1 // pred_fallthru
      _
    // Predicated region
    $region62: #{mixture_of_experts_forward.1} parent=1 // pred_check
      _
    $region63: #{mixture_of_experts_forward.1} parent=1 // pred_check_branch
      %57 = sbr.rel (0) target = $region65
    $region64: #{mixture_of_experts_forward.1} parent=1 // pred_region
      _
    $region65: #{mixture_of_experts_forward.1} parent=1 // pred_fallthru
      _
    // Predicated region
    $region66: #{mixture_of_experts_forward.1} parent=1 // pred_check
      _
    $region67: #{mixture_of_experts_forward.1} parent=1 // pred_check_branch
      %59 = sbr.rel (0) target = $region69
    $region68: #{mixture_of_experts_forward.1} parent=1 // pred_region
      _
    $region69: #{mixture_of_experts_forward.1} parent=1 // pred_fallthru
      _
    // Predicated region
    $region70: #{mixture_of_experts_forward.1} parent=1 // pred_check
      _
    $region71: #{mixture_of_experts_forward.1} parent=1 // pred_check_branch
      %61 = sbr.rel (0) target = $region73
    $region72: #{mixture_of_experts_forward.1} parent=1 // pred_region
      _
    $region73: #{mixture_of_experts_forward.1} parent=1 // pred_fallthru
      _
    %v63 = vld [vmem:[%s0] sm:$0xff]
    %v64 = vpack.c.bf16 %v63, %v63
    %v65 = vld [vmem:[%s1] sm:$0xf]
    %v66 = vld [vmem:[%s1 + $0x4] sm:$0xf]
    %v67 = vld [vmem:[%s1 + $0x8] sm:$0xf]
    %v68 = vld [vmem:[%s1 + $0xc] sm:$0xf]
    %v69 = vld [vmem:[%s1 + $0x10] sm:$0xf]
    %v70 = vld [vmem:[%s1 + $0x14] sm:$0xf]
    %v71 = vld [vmem:[%s1 + $0x18] sm:$0xf]
    %v72 = vld [vmem:[%s1 + $0x1c] sm:$0xf]
    %v73 = vld [vmem:[%s2] sm:$0x1]
    %v75 = vlaneseq
    %v76 = vshrl.u32 %v75, 7
    %v77 = vsub.s32 0, %v76
    %v78 = vrot.slane %v73, %v77
    %v88 = vunpack.c.l.b16 %v65
    %v89 = vunpack.c.l.b16 %v66
    %v90 = vunpack.c.l.b16 %v67
    %v91 = vunpack.c.l.b16 %v68
    %v92 = vunpack.c.l.b16 %v69
    %v93 = vunpack.c.l.b16 %v70
    %v94 = vunpack.c.l.b16 %v71
    %v95 = vunpack.c.l.b16 %v72
    %v96 = vpack.c.b16 %v89, %v88
    %v97 = vpack.c.b16 %v91, %v90
    %v98 = vpack.c.b16 %v93, %v92
    %v99 = vpack.c.b16 %v95, %v94
    %vm104 = vcmask 523264
    %v106 = vsel %vm104, %v64, 0
    %108 = vmatprep.subr.bf16.mxu0 0
    %109 = vmatpush1.bf16.msra.mxu0 %v96
    %110 = vmatprep.subr.bf16.mxu0 0
    %111 = vmatpush1.bf16.msra.mxu0 %v97
    %112 = vmatprep.subr.bf16.mxu0 0
    %113 = vmatpush1.bf16.msra.mxu0 %v98
    %114 = vmatprep.subr.bf16.mxu0 0
    %115 = vmatpush1.bf16.msra.mxu0 %v99
    %116 = vmatprep.subr.bf16.mxu0 0
    %117 = vmatpush1.bf16.msra.mxu0 0
    %118 = vmatprep.subr.bf16.mxu0 0
    %119 = vmatpush1.bf16.msra.mxu0 0
    %120 = vmatprep.subr.bf16.mxu0 0
    %121 = vmatpush1.bf16.msra.mxu0 0
    %122 = vmatprep.subr.bf16.mxu0 0
    %123 = vmatpush1.bf16.msra.mxu0 0
    %124 = vmatprep.subr.bf16.mxu0 0
    %125 = vmatpush1.bf16.msra.mxu0 0
    %126 = vmatprep.subr.bf16.mxu0 0
    %127 = vmatpush1.bf16.msra.mxu0 0
    %128 = vmatprep.subr.bf16.mxu0 0
    %129 = vmatpush1.bf16.msra.mxu0 0
    %130 = vmatprep.subr.bf16.mxu0 0
    %131 = vmatpush1.bf16.msra.mxu0 0
    %132 = vmatprep.subr.bf16.mxu0 0
    %133 = vmatpush1.bf16.msra.mxu0 0
    %134 = vmatprep.subr.bf16.mxu0 0
    %135 = vmatpush1.bf16.msra.mxu0 0
    %136 = vmatprep.subr.bf16.mxu0 0
    %137 = vmatpush1.bf16.msra.mxu0 0
    %138 = vmatprep.subr.bf16.mxu0 0
    %139 = vmatpush1.bf16.msra.mxu0 0
    %140 = vmatprep.mubr.bf16.mxu0 0
    %141 = vmatmul.mubr.bf16.gmra.mrb[0].mxu0 %v106
    %v142 = vpop.f32.mrb[0].mxu0
    %v143 = vadd.f32 %v78, %v142
    %v144 = vpop.f32.mrb[0].mxu0
    %v145 = vpop.f32.mrb[0].mxu0
    %v146 = vpop.f32.mrb[0].mxu0
    %147 = vdwg.mxu0
    %vm148 = vcmask 31744
    %v149 = vsel %vm148, %v143, -inf
    %150 = vmax.xlane.f32.xlu0 %v149
    %v151 = vpop.xlane.xlu0 %150
    %v152 = vsub.f32 %v143, %v151
    %v153 = vmul.f32 %v152, 1.442695
    %v154 = vpow.pop %v153
    %v155 = vsel %vm148, %v154, 0.0
    %156 = vadd.xlane.f32.xlu0 %v155
    %v157 = vpop.xlane.xlu0 %156
    %v158 = vrcp.pop %v157
    %v159 = vmul.f32 %v154, %v158
    %v160 = vld [vmem:[%s3] sm:$0xff]
    %v161 = vld [vmem:[%s3 + $0x8] sm:$0xf]
    %v162 = vld [vmem:[%s3 + $0xc] sm:$0xff]
    %v163 = vld [vmem:[%s3 + $0x14] sm:$0xf]
    %v164 = vld [vmem:[%s3 + $0x18] sm:$0xff]
    %v165 = vld [vmem:[%s3 + $0x20] sm:$0xf]
    %v166 = vld [vmem:[%s3 + $0x24] sm:$0xff]
    %v167 = vld [vmem:[%s3 + $0x2c] sm:$0xf]
    %v168 = vld [vmem:[%s3 + $0x30] sm:$0xff]
    %v169 = vld [vmem:[%s3 + $0x38] sm:$0xf]
    %v170 = vld [vmem:[%s3 + $0x3c] sm:$0xff]
    %v171 = vld [vmem:[%s3 + $0x44] sm:$0xf]
    %v172 = vld [vmem:[%s3 + $0x48] sm:$0xff]
    %v173 = vld [vmem:[%s3 + $0x50] sm:$0xf]
    %v174 = vld [vmem:[%s3 + $0x54] sm:$0xff]
    %v175 = vld [vmem:[%s3 + $0x5c] sm:$0xf]
    %v176 = vld [vmem:[%s4] sm:$0x7]
    %v178 = vlaneseq
    %v179 = vshrl.u32 %v178, 7
    %v180 = vsub.s32 0, %v179
    %v181 = vrot.slane %v176, %v180
    %v182 = vlaneseq
    %v183 = vshrl.u32 %v182, 7
    %v184 = vsub.s32 1, %v183
    %v185 = vrot.slane %v176, %v184
    %v186 = vlaneseq
    %v187 = vshrl.u32 %v186, 7
    %v188 = vsub.s32 2, %v187
    %v189 = vrot.slane %v176, %v188
    %v209 = vunpack.c.l.b16 %v160
    %v210 = vunpack.c.h.b16 %v160
    %v211 = vunpack.c.l.b16 %v161
    %v212 = vunpack.c.l.b16 %v162
    %v213 = vunpack.c.h.b16 %v162
    %v214 = vunpack.c.l.b16 %v163
    %v215 = vunpack.c.l.b16 %v164
    %v216 = vunpack.c.h.b16 %v164
    %v217 = vunpack.c.l.b16 %v165
    %v218 = vunpack.c.l.b16 %v166
    %v219 = vunpack.c.h.b16 %v166
    %v220 = vunpack.c.l.b16 %v167
    %v221 = vunpack.c.l.b16 %v168
    %v222 = vunpack.c.h.b16 %v168
    %v223 = vunpack.c.l.b16 %v169
    %v224 = vunpack.c.l.b16 %v170
    %v225 = vunpack.c.h.b16 %v170
    %v226 = vunpack.c.l.b16 %v171
    %v227 = vunpack.c.l.b16 %v172
    %v228 = vunpack.c.h.b16 %v172
    %v229 = vunpack.c.l.b16 %v173
    %v230 = vunpack.c.l.b16 %v174
    %v231 = vunpack.c.h.b16 %v174
    %v232 = vunpack.c.l.b16 %v175
    %v233 = vpack.c.b16 %v212, %v209
    %v234 = vpack.c.b16 %v213, %v210
    %v235 = vpack.c.b16 %v214, %v211
    %v236 = vpack.c.b16 %v218, %v215
    %v237 = vpack.c.b16 %v219, %v216
    %v238 = vpack.c.b16 %v220, %v217
    %v239 = vpack.c.b16 %v224, %v221
    %v240 = vpack.c.b16 %v225, %v222
    %v241 = vpack.c.b16 %v226, %v223
    %v242 = vpack.c.b16 %v230, %v227
    %v243 = vpack.c.b16 %v231, %v228
    %v244 = vpack.c.b16 %v232, %v229
    %257 = vmatprep.subr.bf16.mxu0 %v234
    %258 = vmatpush1.bf16.msra.mxu0 %v233
    %259 = vmatprep.subr.bf16.mxu0 %v237
    %260 = vmatpush1.bf16.msra.mxu0 %v236
    %261 = vmatprep.subr.bf16.mxu0 %v240
    %262 = vmatpush1.bf16.msra.mxu0 %v239
    %263 = vmatprep.subr.bf16.mxu0 %v243
    %264 = vmatpush1.bf16.msra.mxu0 %v242
    %265 = vmatprep.subr.bf16.mxu0 0
    %266 = vmatpush1.bf16.msra.mxu0 0
    %267 = vmatprep.subr.bf16.mxu0 0
    %268 = vmatpush1.bf16.msra.mxu0 0
    %269 = vmatprep.subr.bf16.mxu0 0
    %270 = vmatpush1.bf16.msra.mxu0 0
    %271 = vmatprep.subr.bf16.mxu0 0
    %272 = vmatpush1.bf16.msra.mxu0 0
    %273 = vmatprep.subr.bf16.mxu0 0
    %274 = vmatpush1.bf16.msra.mxu0 0
    %275 = vmatprep.subr.bf16.mxu0 0
    %276 = vmatpush1.bf16.msra.mxu0 0
    %277 = vmatprep.subr.bf16.mxu0 0
    %278 = vmatpush1.bf16.msra.mxu0 0
    %279 = vmatprep.subr.bf16.mxu0 0
    %280 = vmatpush1.bf16.msra.mxu0 0
    %281 = vmatprep.subr.bf16.mxu0 0
    %282 = vmatpush1.bf16.msra.mxu0 0
    %283 = vmatprep.subr.bf16.mxu0 0
    %284 = vmatpush1.bf16.msra.mxu0 0
    %285 = vmatprep.subr.bf16.mxu0 0
    %286 = vmatpush1.bf16.msra.mxu0 0
    %287 = vmatprep.subr.bf16.mxu0 0
    %288 = vmatpush1.bf16.msra.mxu0 0
    %289 = vmatprep.mubr.bf16.mxu0 0
    %290 = vmatmul.mubr.bf16.gmra.mrb[0].mxu0 %v106
    %v291 = vpop.f32.mrb[0].mxu0
    %v292 = vadd.f32 %v181, %v291
    %v293 = vpop.f32.mrb[0].mxu0
    %v294 = vadd.f32 %v185, %v293
    %v295 = vpop.f32.mrb[0].mxu0
    %v296 = vpop.f32.mrb[0].mxu0
    %297 = vdwg.mxu0
    %298 = vmatprep.subr.bf16.mxu0 0
    %299 = vmatpush1.bf16.msra.mxu0 %v235
    %300 = vmatprep.subr.bf16.mxu0 0
    %301 = vmatpush1.bf16.msra.mxu0 %v238
    %302 = vmatprep.subr.bf16.mxu0 0
    %303 = vmatpush1.bf16.msra.mxu0 %v241
    %304 = vmatprep.subr.bf16.mxu0 0
    %305 = vmatpush1.bf16.msra.mxu0 %v244
    %306 = vmatprep.subr.bf16.mxu0 0
    %307 = vmatpush1.bf16.msra.mxu0 0
    %308 = vmatprep.subr.bf16.mxu0 0
    %309 = vmatpush1.bf16.msra.mxu0 0
    %310 = vmatprep.subr.bf16.mxu0 0
    %311 = vmatpush1.bf16.msra.mxu0 0
    %312 = vmatprep.subr.bf16.mxu0 0
    %313 = vmatpush1.bf16.msra.mxu0 0
    %314 = vmatprep.subr.bf16.mxu0 0
    %315 = vmatpush1.bf16.msra.mxu0 0
    %316 = vmatprep.subr.bf16.mxu0 0
    %317 = vmatpush1.bf16.msra.mxu0 0
    %318 = vmatprep.subr.bf16.mxu0 0
    %319 = vmatpush1.bf16.msra.mxu0 0
    %320 = vmatprep.subr.bf16.mxu0 0
    %321 = vmatpush1.bf16.msra.mxu0 0
    %322 = vmatprep.subr.bf16.mxu0 0
    %323 = vmatpush1.bf16.msra.mxu0 0
    %324 = vmatprep.subr.bf16.mxu0 0
    %325 = vmatpush1.bf16.msra.mxu0 0
    %326 = vmatprep.subr.bf16.mxu0 0
    %327 = vmatpush1.bf16.msra.mxu0 0
    %328 = vmatprep.subr.bf16.mxu0 0
    %329 = vmatpush1.bf16.msra.mxu0 0
    %330 = vmatprep.mubr.bf16.mxu0 0
    %331 = vmatmul.mubr.bf16.gmra.mrb[0].mxu0 %v106
    %v332 = vpop.f32.mrb[0].mxu0
    %v333 = vadd.f32 %v189, %v332
    %v334 = vpop.f32.mrb[0].mxu0
    %v335 = vpop.f32.mrb[0].mxu0
    %v336 = vpop.f32.mrb[0].mxu0
    %337 = vdwg.mxu0
    %v338 = vmax.f32 %v292, 0.0
    %v339 = vmax.f32 %v294, 0.0
    %v340 = vmax.f32 %v333, 0.0
    %v341 = vpack.c.bf16 %v159, %v159
    %v342 = vld [vmem:[%s5] sm:$0x3f]
    %v344 = vcombine.high %v342, %v342
    %v346 = vunpack.c.l.s4 1983009808
    %v347 = vunpack.c.0.s8 %v346
    %v348 = vlaneseq
    %v349 = vshrl.u32 %v348, 7
    %v350 = vsub.s32 %v347, %v349
    %v351 = vrot.slane %v342, %v350
    %v353 = vunpack.c.l.s4 1983009808
    %v354 = vunpack.c.0.s8 %v353
    %v355 = vlaneseq
    %v356 = vshrl.u32 %v355, 7
    %v357 = vsub.s32 %v354, %v356
    %v358 = vrot.slane %v344, %v357
    %v359 = vcombine.high %v351, %v351
    %v361 = vsel %vm148, %v341, 0
    %vm363 = vcmask 1041408
    %v365 = vsel %vm363, %v351, 0
    %v368 = vsel %vm363, %v359, 0
    %v371 = vsel %vm363, %v358, 0
    %373 = vmatprep.subr.bf16.mxu0 %v368
    %374 = vmatpush1.bf16.msra.mxu0 %v365
    %375 = vmatprep.subr.bf16.mxu0 0
    %376 = vmatpush1.bf16.msra.mxu0 0
    %377 = vmatprep.subr.bf16.mxu0 0
    %378 = vmatpush1.bf16.msra.mxu0 0
    %379 = vmatprep.subr.bf16.mxu0 0
    %380 = vmatpush1.bf16.msra.mxu0 0
    %381 = vmatprep.subr.bf16.mxu0 0
    %382 = vmatpush1.bf16.msra.mxu0 0
    %383 = vmatprep.subr.bf16.mxu0 0
    %384 = vmatpush1.bf16.msra.mxu0 0
    %385 = vmatprep.subr.bf16.mxu0 0
    %386 = vmatpush1.bf16.msra.mxu0 0
    %387 = vmatprep.subr.bf16.mxu0 0
    %388 = vmatpush1.bf16.msra.mxu0 0
    %389 = vmatprep.subr.bf16.mxu0 0
    %390 = vmatpush1.bf16.msra.mxu0 0
    %391 = vmatprep.subr.bf16.mxu0 0
    %392 = vmatpush1.bf16.msra.mxu0 0
    %393 = vmatprep.subr.bf16.mxu0 0
    %394 = vmatpush1.bf16.msra.mxu0 0
    %395 = vmatprep.subr.bf16.mxu0 0
    %396 = vmatpush1.bf16.msra.mxu0 0
    %397 = vmatprep.subr.bf16.mxu0 0
    %398 = vmatpush1.bf16.msra.mxu0 0
    %399 = vmatprep.subr.bf16.mxu0 0
    %400 = vmatpush1.bf16.msra.mxu0 0
    %401 = vmatprep.subr.bf16.mxu0 0
    %402 = vmatpush1.bf16.msra.mxu0 0
    %403 = vmatprep.subr.bf16.mxu0 0
    %404 = vmatpush1.bf16.msra.mxu0 0
    %405 = vmatprep.mubr.bf16.mxu0 0
    %406 = vmatmul.mubr.bf16.gmra.mrb[0].mxu0 %v361
    %v407 = vpop.f32.mrb[0].mxu0
    %v408 = vadd.f32 0.0, %v407
    %v409 = vpop.f32.mrb[0].mxu0
    %v410 = vadd.f32 0.0, %v409
    %v411 = vpop.f32.mrb[0].mxu0
    %v412 = vpop.f32.mrb[0].mxu0
    %413 = vdwg.mxu0
    %414 = vmatprep.subr.bf16.mxu0 0
    %415 = vmatpush1.bf16.msra.mxu0 %v371
    %416 = vmatprep.subr.bf16.mxu0 0
    %417 = vmatpush1.bf16.msra.mxu0 0
    %418 = vmatprep.subr.bf16.mxu0 0
    %419 = vmatpush1.bf16.msra.mxu0 0
    %420 = vmatprep.subr.bf16.mxu0 0
    %421 = vmatpush1.bf16.msra.mxu0 0
    %422 = vmatprep.subr.bf16.mxu0 0
    %423 = vmatpush1.bf16.msra.mxu0 0
    %424 = vmatprep.subr.bf16.mxu0 0
    %425 = vmatpush1.bf16.msra.mxu0 0
    %426 = vmatprep.subr.bf16.mxu0 0
    %427 = vmatpush1.bf16.msra.mxu0 0
    %428 = vmatprep.subr.bf16.mxu0 0
    %429 = vmatpush1.bf16.msra.mxu0 0
    %430 = vmatprep.subr.bf16.mxu0 0
    %431 = vmatpush1.bf16.msra.mxu0 0
    %432 = vmatprep.subr.bf16.mxu0 0
    %433 = vmatpush1.bf16.msra.mxu0 0
    %434 = vmatprep.subr.bf16.mxu0 0
    %435 = vmatpush1.bf16.msra.mxu0 0
    %436 = vmatprep.subr.bf16.mxu0 0
    %437 = vmatpush1.bf16.msra.mxu0 0
    %438 = vmatprep.subr.bf16.mxu0 0
    %439 = vmatpush1.bf16.msra.mxu0 0
    %440 = vmatprep.subr.bf16.mxu0 0
    %441 = vmatpush1.bf16.msra.mxu0 0
    %442 = vmatprep.subr.bf16.mxu0 0
    %443 = vmatpush1.bf16.msra.mxu0 0
    %444 = vmatprep.subr.bf16.mxu0 0
    %445 = vmatpush1.bf16.msra.mxu0 0
    %446 = vmatprep.mubr.bf16.mxu0 0
    %447 = vmatmul.mubr.bf16.gmra.mrb[0].mxu0 %v361
    %v448 = vpop.f32.mrb[0].mxu0
    %v449 = vadd.f32 0.0, %v448
    %v450 = vpop.f32.mrb[0].mxu0
    %v451 = vpop.f32.mrb[0].mxu0
    %v452 = vpop.f32.mrb[0].mxu0
    %453 = vdwg.mxu0
    %v454 = vmul.f32 %v338, %v408
    %v455 = vmul.f32 %v339, %v410
    %v456 = vmul.f32 %v340, %v449
    %v457 = vpack.c.bf16 %v454, %v454
    %v458 = vpack.c.bf16 %v455, %v455
    %v459 = vpack.c.bf16 %v456, %v456
    %v460 = vld [vmem:[%s6] sm:$0xf]
    %v461 = vld [vmem:[%s6 + $0x4] sm:$0xf]
    %v462 = vld [vmem:[%s6 + $0x8] sm:$0xf]
    %v463 = vld [vmem:[%s6 + $0xc] sm:$0xf]
    %v464 = vld [vmem:[%s6 + $0x10] sm:$0xf]
    %v465 = vld [vmem:[%s6 + $0x14] sm:$0xf]
    %v466 = vld [vmem:[%s6 + $0x18] sm:$0xf]
    %v467 = vld [vmem:[%s6 + $0x1c] sm:$0xf]
    %v468 = vld [vmem:[%s6 + $0x20] sm:$0xf]
    %v469 = vld [vmem:[%s6 + $0x24] sm:$0xf]
    %v470 = vld [vmem:[%s6 + $0x28] sm:$0xf]
    %v471 = vld [vmem:[%s6 + $0x2c] sm:$0xf]
    %v472 = vld [vmem:[%s6 + $0x30] sm:$0xf]
    %v473 = vld [vmem:[%s6 + $0x34] sm:$0xf]
    %v474 = vld [vmem:[%s6 + $0x38] sm:$0xf]
    %v475 = vld [vmem:[%s6 + $0x3c] sm:$0xf]
    %v476 = vld [vmem:[%s6 + $0x40] sm:$0xf]
    %v477 = vld [vmem:[%s6 + $0x44] sm:$0xf]
    %v478 = vld [vmem:[%s6 + $0x48] sm:$0xf]
    %v479 = vld [vmem:[%s6 + $0x4c] sm:$0xf]
    %v480 = vld [vmem:[%s6 + $0x50] sm:$0xf]
    %v481 = vld [vmem:[%s6 + $0x54] sm:$0xf]
    %v482 = vld [vmem:[%s6 + $0x58] sm:$0xf]
    %v483 = vld [vmem:[%s6 + $0x5c] sm:$0xf]
    %v484 = vld [vmem:[%s6 + $0x60] sm:$0xf]
    %v485 = vld [vmem:[%s6 + $0x64] sm:$0xf]
    %v486 = vld [vmem:[%s6 + $0x68] sm:$0xf]
    %v487 = vld [vmem:[%s6 + $0x6c] sm:$0xf]
    %v488 = vld [vmem:[%s6 + $0x70] sm:$0xf]
    %v489 = vld [vmem:[%s6 + $0x74] sm:$0xf]
    %v490 = vld [vmem:[%s6 + $0x78] sm:$0xf]
    %v491 = vld [vmem:[%s6 + $0x7c] sm:$0xf]
    %v492 = vld [vmem:[%s6 + $0x80] sm:$0xf]
    %v493 = vld [vmem:[%s7] sm:$0x1]
    %v495 = vlaneseq
    %v496 = vshrl.u32 %v495, 7
    %v497 = vsub.s32 0, %v496
    %v498 = vrot.slane %v493, %v497
    %v533 = vunpack.c.l.b16 %v460
    %v534 = vunpack.c.l.b16 %v461
    %v535 = vunpack.c.l.b16 %v462
    %v536 = vunpack.c.l.b16 %v463
    %v537 = vunpack.c.l.b16 %v464
    %v538 = vunpack.c.l.b16 %v465
    %v539 = vunpack.c.l.b16 %v466
    %v540 = vunpack.c.l.b16 %v467
    %v541 = vunpack.c.l.b16 %v468
    %v542 = vunpack.c.l.b16 %v469
    %v543 = vunpack.c.l.b16 %v470
    %v544 = vunpack.c.l.b16 %v471
    %v545 = vunpack.c.l.b16 %v472
    %v546 = vunpack.c.l.b16 %v473
    %v547 = vunpack.c.l.b16 %v474
    %v548 = vunpack.c.l.b16 %v475
    %v549 = vunpack.c.l.b16 %v476
    %v550 = vunpack.c.l.b16 %v477
    %v551 = vunpack.c.l.b16 %v478
    %v552 = vunpack.c.l.b16 %v479
    %v553 = vunpack.c.l.b16 %v480
    %v554 = vunpack.c.l.b16 %v481
    %v555 = vunpack.c.l.b16 %v482
    %v556 = vunpack.c.l.b16 %v483
    %v557 = vunpack.c.l.b16 %v484
    %v558 = vunpack.c.l.b16 %v485
    %v559 = vunpack.c.l.b16 %v486
    %v560 = vunpack.c.l.b16 %v487
    %v561 = vunpack.c.l.b16 %v488
    %v562 = vunpack.c.l.b16 %v489
    %v563 = vunpack.c.l.b16 %v490
    %v564 = vunpack.c.l.b16 %v491
    %v565 = vunpack.c.l.b16 %v492
    %v566 = vpack.c.b16 %v534, %v533
    %v567 = vpack.c.b16 %v536, %v535
    %v568 = vpack.c.b16 %v538, %v537
    %v569 = vpack.c.b16 %v540, %v539
    %v570 = vpack.c.b16 %v542, %v541
    %v571 = vpack.c.b16 %v544, %v543
    %v572 = vpack.c.b16 %v546, %v545
    %v573 = vpack.c.b16 %v548, %v547
    %v574 = vpack.c.b16 %v550, %v549
    %v575 = vpack.c.b16 %v552, %v551
    %v576 = vpack.c.b16 %v554, %v553
    %v577 = vpack.c.b16 %v556, %v555
    %v578 = vpack.c.b16 %v558, %v557
    %v579 = vpack.c.b16 %v560, %v559
    %v580 = vpack.c.b16 %v562, %v561
    %v581 = vpack.c.b16 %v564, %v563
    %v582 = vpack.c.b16 %v565, %v565
    %vm599 = vcmask 64512
    %v601 = vsel %vm599, %v459, 0
    %vm603 = vcmask 1043456
    %v605 = vsel %vm603, %v582, 0
    %607 = vmatprep.subr.bf16.mxu0 0
    %608 = vmatpush1.bf16.msra.mxu0 %v566
    %609 = vmatprep.subr.bf16.mxu0 0
    %610 = vmatpush1.bf16.msra.mxu0 %v567
    %611 = vmatprep.subr.bf16.mxu0 0
    %612 = vmatpush1.bf16.msra.mxu0 %v568
    %613 = vmatprep.subr.bf16.mxu0 0
    %614 = vmatpush1.bf16.msra.mxu0 %v569
    %615 = vmatprep.subr.bf16.mxu0 0
    %616 = vmatpush1.bf16.msra.mxu0 %v570
    %617 = vmatprep.subr.bf16.mxu0 0
    %618 = vmatpush1.bf16.msra.mxu0 %v571
    %619 = vmatprep.subr.bf16.mxu0 0
    %620 = vmatpush1.bf16.msra.mxu0 %v572
    %621 = vmatprep.subr.bf16.mxu0 0
    %622 = vmatpush1.bf16.msra.mxu0 %v573
    %623 = vmatprep.subr.bf16.mxu0 0
    %624 = vmatpush1.bf16.msra.mxu0 %v574
    %625 = vmatprep.subr.bf16.mxu0 0
    %626 = vmatpush1.bf16.msra.mxu0 %v575
    %627 = vmatprep.subr.bf16.mxu0 0
    %628 = vmatpush1.bf16.msra.mxu0 %v576
    %629 = vmatprep.subr.bf16.mxu0 0
    %630 = vmatpush1.bf16.msra.mxu0 %v577
    %631 = vmatprep.subr.bf16.mxu0 0
    %632 = vmatpush1.bf16.msra.mxu0 %v578
    %633 = vmatprep.subr.bf16.mxu0 0
    %634 = vmatpush1.bf16.msra.mxu0 %v579
    %635 = vmatprep.subr.bf16.mxu0 0
    %636 = vmatpush1.bf16.msra.mxu0 %v580
    %637 = vmatprep.subr.bf16.mxu0 0
    %638 = vmatpush1.bf16.msra.mxu0 %v581
    %639 = vmatprep.mubr.bf16.mxu0 %v458
    %640 = vmatmul.mubr.bf16.gmra.mrb[0].mxu0 %v457
    %v641 = vpop.f32.mrb[0].mxu0
    %v642 = vadd.f32 %v498, %v641
    %v643 = vpop.f32.mrb[0].mxu0
    %v644 = vpop.f32.mrb[0].mxu0
    %v645 = vpop.f32.mrb[0].mxu0
    %646 = vdwg.mxu0
    %647 = vmatprep.subr.bf16.mxu0 0
    %648 = vmatpush1.bf16.msra.mxu0 %v605
    %649 = vmatprep.subr.bf16.mxu0 0
    %650 = vmatpush1.bf16.msra.mxu0 0
    %651 = vmatprep.subr.bf16.mxu0 0
    %652 = vmatpush1.bf16.msra.mxu0 0
    %653 = vmatprep.subr.bf16.mxu0 0
    %654 = vmatpush1.bf16.msra.mxu0 0
    %655 = vmatprep.subr.bf16.mxu0 0
    %656 = vmatpush1.bf16.msra.mxu0 0
    %657 = vmatprep.subr.bf16.mxu0 0
    %658 = vmatpush1.bf16.msra.mxu0 0
    %659 = vmatprep.subr.bf16.mxu0 0
    %660 = vmatpush1.bf16.msra.mxu0 0
    %661 = vmatprep.subr.bf16.mxu0 0
    %662 = vmatpush1.bf16.msra.mxu0 0
    %663 = vmatprep.subr.bf16.mxu0 0
    %664 = vmatpush1.bf16.msra.mxu0 0
    %665 = vmatprep.subr.bf16.mxu0 0
    %666 = vmatpush1.bf16.msra.mxu0 0
    %667 = vmatprep.subr.bf16.mxu0 0
    %668 = vmatpush1.bf16.msra.mxu0 0
    %669 = vmatprep.subr.bf16.mxu0 0
    %670 = vmatpush1.bf16.msra.mxu0 0
    %671 = vmatprep.subr.bf16.mxu0 0
    %672 = vmatpush1.bf16.msra.mxu0 0
    %673 = vmatprep.subr.bf16.mxu0 0
    %674 = vmatpush1.bf16.msra.mxu0 0
    %675 = vmatprep.subr.bf16.mxu0 0
    %676 = vmatpush1.bf16.msra.mxu0 0
    %677 = vmatprep.subr.bf16.mxu0 0
    %678 = vmatpush1.bf16.msra.mxu0 0
    %679 = vmatprep.mubr.bf16.mxu0 0
    %680 = vmatmul.mubr.bf16.gmra.mrb[0].mxu0 %v601
    %v681 = vpop.f32.mrb[0].mxu0
    %v682 = vadd.f32 %v642, %v681
    %v683 = vpop.f32.mrb[0].mxu0
    %v684 = vpop.f32.mrb[0].mxu0
    %v685 = vpop.f32.mrb[0].mxu0
    %686 = vdwg.mxu0
    %v687 = vld [vmem:[%s8] sm:$0xff]
    %v688 = vmul.f32 %v682, %v687
    %v689 = vld [vmem:[%s10] sm:$0xff]
    %v691 = vsel %vm599, %v689, 0
    %693 = vmatprep.subr.mxu0 0.0
    %694 = vmatpush1.msra.mxu0 %v688
    %695 = vmatprep.subr.mxu0 0.0
    %696 = vmatpush1.msra.mxu0 0.0
    %697 = vmatprep.subr.mxu0 0.0
    %698 = vmatpush1.msra.mxu0 0.0
    %699 = vmatprep.subr.mxu0 0.0
    %700 = vmatpush1.msra.mxu0 0.0
    %701 = vmatprep.subr.mxu0 0.0
    %702 = vmatpush1.msra.mxu0 0.0
    %703 = vmatprep.subr.mxu0 0.0
    %704 = vmatpush1.msra.mxu0 0.0
    %705 = vmatprep.subr.mxu0 0.0
    %706 = vmatpush1.msra.mxu0 0.0
    %707 = vmatprep.subr.mxu0 0.0
    %708 = vmatpush1.msra.mxu0 0.0
    %709 = vmatprep.subr.mxu0 0.0
    %710 = vmatpush1.msra.mxu0 0.0
    %711 = vmatprep.subr.mxu0 0.0
    %712 = vmatpush1.msra.mxu0 0.0
    %713 = vmatprep.subr.mxu0 0.0
    %714 = vmatpush1.msra.mxu0 0.0
    %715 = vmatprep.subr.mxu0 0.0
    %716 = vmatpush1.msra.mxu0 0.0
    %717 = vmatprep.subr.mxu0 0.0
    %718 = vmatpush1.msra.mxu0 0.0
    %719 = vmatprep.subr.mxu0 0.0
    %720 = vmatpush1.msra.mxu0 0.0
    %721 = vmatprep.subr.mxu0 0.0
    %722 = vmatpush1.msra.mxu0 0.0
    %723 = vmatprep.subr.mxu0 0.0
    %724 = vmatpush1.msra.mxu0 0.0
    %725 = vmatprep.subr.mxu0 0.0
    %726 = vmatpush1.msra.mxu0 0.0
    %727 = vmatprep.subr.mxu0 0.0
    %728 = vmatpush1.msra.mxu0 0.0
    %729 = vmatprep.subr.mxu0 0.0
    %730 = vmatpush1.msra.mxu0 0.0
    %731 = vmatprep.subr.mxu0 0.0
    %732 = vmatpush1.msra.mxu0 0.0
    %733 = vmatprep.subr.mxu0 0.0
    %734 = vmatpush1.msra.mxu0 0.0
    %735 = vmatprep.subr.mxu0 0.0
    %736 = vmatpush1.msra.mxu0 0.0
    %737 = vmatprep.subr.mxu0 0.0
    %738 = vmatpush1.msra.mxu0 0.0
    %739 = vmatprep.subr.mxu0 0.0
    %740 = vmatpush1.msra.mxu0 0.0
    %741 = vmatprep.subr.mxu0 0.0
    %742 = vmatpush1.msra.mxu0 0.0
    %743 = vmatprep.subr.mxu0 0.0
    %744 = vmatpush1.msra.mxu0 0.0
    %745 = vmatprep.subr.mxu0 0.0
    %746 = vmatpush1.msra.mxu0 0.0
    %747 = vmatprep.subr.mxu0 0.0
    %748 = vmatpush1.msra.mxu0 0.0
    %749 = vmatprep.subr.mxu0 0.0
    %750 = vmatpush1.msra.mxu0 0.0
    %751 = vmatprep.subr.mxu0 0.0
    %752 = vmatpush1.msra.mxu0 0.0
    %753 = vmatprep.subr.mxu0 0.0
    %754 = vmatpush1.msra.mxu0 0.0
    %755 = vmatprep.subr.mxu0 0.0
    %756 = vmatpush1.msra.mxu0 0.0
    %757 = vmatprep.mubr.f32.mxu0 0.0
    %758 = vmatmul.mubr.f32.gmra.mrb[0].mxu0 %v691
    %v759 = vpop.f32.mrb[0].mxu0
    %v760 = vadd.f32 0.0, %v759
    %v761 = vpop.f32.mrb[0].mxu0
    %762 = vdwg.mxu0
    %v763 = vsel %vm104, %v760, 0.0
    %764 = vadd.xlane.f32.xlu0 %v763
    %v765 = vpop.xlane.xlu0 %764
    %v766 = vld [vmem:[#allocation2] sm:$0x1]
    %v768 = vlaneseq
    %v769 = vshrl.u32 %v768, 7
    %v770 = vsub.s32 0, %v769
    %v771 = vrot.slane %v766, %v770
    %v773 = vadd.f32 %v765, %v771
    %v774 = vsub.f32 0.0, %v773
    %v775 = vmul.f32 %v774, 1.442695
    %v776 = vpow.pop %v775
    %v777 = vadd.f32 %v776, 1.0
    %v778 = vrcp.pop %v777
    %v779 = vmul.f32 1.0, %v778
    %vm780 = vcmp.gt.f32.partialorder %v779, 0.3
    %v781 = vsel %vm780, 1, 0
    %v782 = vcvt.s32.f32 %v781
    %vm783 = vcmask 7168
    %v784 = vsel %vm783, %v782, 0.0
    %785 = vadd.xlane.f32.xlu0 %v784
    %v786 = vpop.xlane.xlu0 %785
    %v787 = vrot.slane %v786, 4
    %v788 = vadd.f32 %v786, %v787
    %v789 = vrot.slane %v788, 2
    %v790 = vadd.f32 %v788, %v789
    %v791 = vrot.slane %v790, 1
    %v792 = vadd.f32 %v790, %v791
    %s793 = vtos %v792
    %v794 = vstv %s793
    %vm795 = vcmp.gt.f32.partialorder %v794, 0.0
    %v796 = vsel %vm795, 1, 0
    %v797 = vcvt.s32.f32 %v796
    %v798 = vpack.c.bf16 %v682, %v682
    %v800 = vsel %vm104, %v798, 0
    %802 = vmatprep.subr.bf16.mxu0 0
    %803 = vmatpush1.bf16.msra.mxu0 %v96
    %804 = vmatprep.subr.bf16.mxu0 0
    %805 = vmatpush1.bf16.msra.mxu0 %v97
    %806 = vmatprep.subr.bf16.mxu0 0
    %807 = vmatpush1.bf16.msra.mxu0 %v98
    %808 = vmatprep.subr.bf16.mxu0 0
    %809 = vmatpush1.bf16.msra.mxu0 %v99
    %810 = vmatprep.subr.bf16.mxu0 0
    %811 = vmatpush1.bf16.msra.mxu0 0
    %812 = vmatprep.subr.bf16.mxu0 0
    %813 = vmatpush1.bf16.msra.mxu0 0
    %814 = vmatprep.subr.bf16.mxu0 0
    %815 = vmatpush1.bf16.msra.mxu0 0
    %816 = vmatprep.subr.bf16.mxu0 0
    %817 = vmatpush1.bf16.msra.mxu0 0
    %818 = vmatprep.subr.bf16.mxu0 0
    %819 = vmatpush1.bf16.msra.mxu0 0
    %820 = vmatprep.subr.bf16.mxu0 0
    %821 = vmatpush1.bf16.msra.mxu0 0
    %822 = vmatprep.subr.bf16.mxu0 0
    %823 = vmatpush1.bf16.msra.mxu0 0
    %824 = vmatprep.subr.bf16.mxu0 0
    %825 = vmatpush1.bf16.msra.mxu0 0
    %826 = vmatprep.subr.bf16.mxu0 0
    %827 = vmatpush1.bf16.msra.mxu0 0
    %828 = vmatprep.subr.bf16.mxu0 0
    %829 = vmatpush1.bf16.msra.mxu0 0
    %830 = vmatprep.subr.bf16.mxu0 0
    %831 = vmatpush1.bf16.msra.mxu0 0
    %832 = vmatprep.subr.bf16.mxu0 0
    %833 = vmatpush1.bf16.msra.mxu0 0
    %834 = vmatprep.mubr.bf16.mxu0 0
    %835 = vmatmul.mubr.bf16.gmra.mrb[0].mxu0 %v800
    %v836 = vpop.f32.mrb[0].mxu0
    %v837 = vadd.f32 %v78, %v836
    %v838 = vpop.f32.mrb[0].mxu0
    %v839 = vpop.f32.mrb[0].mxu0
    %v840 = vpop.f32.mrb[0].mxu0
    %841 = vdwg.mxu0
    %v842 = vsel %vm148, %v837, -inf
    %843 = vmax.xlane.f32.xlu0 %v842
    %v844 = vpop.xlane.xlu0 %843
    %v845 = vsub.f32 %v837, %v844
    %v846 = vmul.f32 %v845, 1.442695
    %v847 = vpow.pop %v846
    %v848 = vsel %vm148, %v847, 0.0
    %849 = vadd.xlane.f32.xlu0 %v848
    %v850 = vpop.xlane.xlu0 %849
    %v851 = vrcp.pop %v850
    %v852 = vmul.f32 %v847, %v851
    %853 = vmatprep.subr.bf16.mxu0 %v234
    %854 = vmatpush1.bf16.msra.mxu0 %v233
    %855 = vmatprep.subr.bf16.mxu0 %v237
    %856 = vmatpush1.bf16.msra.mxu0 %v236
    %857 = vmatprep.subr.bf16.mxu0 %v240
    %858 = vmatpush1.bf16.msra.mxu0 %v239
    %859 = vmatprep.subr.bf16.mxu0 %v243
    %860 = vmatpush1.bf16.msra.mxu0 %v242
    %861 = vmatprep.subr.bf16.mxu0 0
    %862 = vmatpush1.bf16.msra.mxu0 0
    %863 = vmatprep.subr.bf16.mxu0 0
    %864 = vmatpush1.bf16.msra.mxu0 0
    %865 = vmatprep.subr.bf16.mxu0 0
    %866 = vmatpush1.bf16.msra.mxu0 0
    %867 = vmatprep.subr.bf16.mxu0 0
    %868 = vmatpush1.bf16.msra.mxu0 0
    %869 = vmatprep.subr.bf16.mxu0 0
    %870 = vmatpush1.bf16.msra.mxu0 0
    %871 = vmatprep.subr.bf16.mxu0 0
    %872 = vmatpush1.bf16.msra.mxu0 0
    %873 = vmatprep.subr.bf16.mxu0 0
    %874 = vmatpush1.bf16.msra.mxu0 0
    %875 = vmatprep.subr.bf16.mxu0 0
    %876 = vmatpush1.bf16.msra.mxu0 0
    %877 = vmatprep.subr.bf16.mxu0 0
    %878 = vmatpush1.bf16.msra.mxu0 0
    %879 = vmatprep.subr.bf16.mxu0 0
    %880 = vmatpush1.bf16.msra.mxu0 0
    %881 = vmatprep.subr.bf16.mxu0 0
    %882 = vmatpush1.bf16.msra.mxu0 0
    %883 = vmatprep.subr.bf16.mxu0 0
    %884 = vmatpush1.bf16.msra.mxu0 0
    %885 = vmatprep.mubr.bf16.mxu0 0
    %886 = vmatmul.mubr.bf16.gmra.mrb[0].mxu0 %v800
    %v887 = vpop.f32.mrb[0].mxu0
    %v888 = vadd.f32 %v181, %v887
    %v889 = vpop.f32.mrb[0].mxu0
    %v890 = vadd.f32 %v185, %v889
    %v891 = vpop.f32.mrb[0].mxu0
    %v892 = vpop.f32.mrb[0].mxu0
    %893 = vdwg.mxu0
    %894 = vmatprep.subr.bf16.mxu0 0
    %895 = vmatpush1.bf16.msra.mxu0 %v235
    %896 = vmatprep.subr.bf16.mxu0 0
    %897 = vmatpush1.bf16.msra.mxu0 %v238
    %898 = vmatprep.subr.bf16.mxu0 0
    %899 = vmatpush1.bf16.msra.mxu0 %v241
    %900 = vmatprep.subr.bf16.mxu0 0
    %901 = vmatpush1.bf16.msra.mxu0 %v244
    %902 = vmatprep.subr.bf16.mxu0 0
    %903 = vmatpush1.bf16.msra.mxu0 0
    %904 = vmatprep.subr.bf16.mxu0 0
    %905 = vmatpush1.bf16.msra.mxu0 0
    %906 = vmatprep.subr.bf16.mxu0 0
    %907 = vmatpush1.bf16.msra.mxu0 0
    %908 = vmatprep.subr.bf16.mxu0 0
    %909 = vmatpush1.bf16.msra.mxu0 0
    %910 = vmatprep.subr.bf16.mxu0 0
    %911 = vmatpush1.bf16.msra.mxu0 0
    %912 = vmatprep.subr.bf16.mxu0 0
    %913 = vmatpush1.bf16.msra.mxu0 0
    %914 = vmatprep.subr.bf16.mxu0 0
    %915 = vmatpush1.bf16.msra.mxu0 0
    %916 = vmatprep.subr.bf16.mxu0 0
    %917 = vmatpush1.bf16.msra.mxu0 0
    %918 = vmatprep.subr.bf16.mxu0 0
    %919 = vmatpush1.bf16.msra.mxu0 0
    %920 = vmatprep.subr.bf16.mxu0 0
    %921 = vmatpush1.bf16.msra.mxu0 0
    %922 = vmatprep.subr.bf16.mxu0 0
    %923 = vmatpush1.bf16.msra.mxu0 0
    %924 = vmatprep.subr.bf16.mxu0 0
    %925 = vmatpush1.bf16.msra.mxu0 0
    %926 = vmatprep.mubr.bf16.mxu0 0
    %927 = vmatmul.mubr.bf16.gmra.mrb[0].mxu0 %v800
    %v928 = vpop.f32.mrb[0].mxu0
    %v929 = vadd.f32 %v189, %v928
    %v930 = vpop.f32.mrb[0].mxu0
    %v931 = vpop.f32.mrb[0].mxu0
    %v932 = vpop.f32.mrb[0].mxu0
    %933 = vdwg.mxu0
    %v934 = vmax.f32 %v888, 0.0
    %v935 = vmax.f32 %v890, 0.0
    %v936 = vmax.f32 %v929, 0.0
    %v937 = vpack.c.bf16 %v852, %v852
    %v939 = vsel %vm148, %v937, 0
    %941 = vmatprep.subr.bf16.mxu0 %v368
    %942 = vmatpush1.bf16.msra.mxu0 %v365
    %943 = vmatprep.subr.bf16.mxu0 0
    %944 = vmatpush1.bf16.msra.mxu0 0
    %945 = vmatprep.subr.bf16.mxu0 0
    %946 = vmatpush1.bf16.msra.mxu0 0
    %947 = vmatprep.subr.bf16.mxu0 0
    %948 = vmatpush1.bf16.msra.mxu0 0
    %949 = vmatprep.subr.bf16.mxu0 0
    %950 = vmatpush1.bf16.msra.mxu0 0
    %951 = vmatprep.subr.bf16.mxu0 0
    %952 = vmatpush1.bf16.msra.mxu0 0
    %953 = vmatprep.subr.bf16.mxu0 0
    %954 = vmatpush1.bf16.msra.mxu0 0
    %955 = vmatprep.subr.bf16.mxu0 0
    %956 = vmatpush1.bf16.msra.mxu0 0
    %957 = vmatprep.subr.bf16.mxu0 0
    %958 = vmatpush1.bf16.msra.mxu0 0
    %959 = vmatprep.subr.bf16.mxu0 0
    %960 = vmatpush1.bf16.msra.mxu0 0
    %961 = vmatprep.subr.bf16.mxu0 0
    %962 = vmatpush1.bf16.msra.mxu0 0
    %963 = vmatprep.subr.bf16.mxu0 0
    %964 = vmatpush1.bf16.msra.mxu0 0
    %965 = vmatprep.subr.bf16.mxu0 0
    %966 = vmatpush1.bf16.msra.mxu0 0
    %967 = vmatprep.subr.bf16.mxu0 0
    %968 = vmatpush1.bf16.msra.mxu0 0
    %969 = vmatprep.subr.bf16.mxu0 0
    %970 = vmatpush1.bf16.msra.mxu0 0
    %971 = vmatprep.subr.bf16.mxu0 0
    %972 = vmatpush1.bf16.msra.mxu0 0
    %973 = vmatprep.mubr.bf16.mxu0 0
    %974 = vmatmul.mubr.bf16.gmra.mrb[0].mxu0 %v939
    %v975 = vpop.f32.mrb[0].mxu0
    %v976 = vadd.f32 0.0, %v975
    %v977 = vpop.f32.mrb[0].mxu0
    %v978 = vadd.f32 0.0, %v977
    %v979 = vpop.f32.mrb[0].mxu0
    %v980 = vpop.f32.mrb[0].mxu0
    %981 = vdwg.mxu0
    %982 = vmatprep.subr.bf16.mxu0 0
    %983 = vmatpush1.bf16.msra.mxu0 %v371
    %984 = vmatprep.subr.bf16.mxu0 0
    %985 = vmatpush1.bf16.msra.mxu0 0
    %986 = vmatprep.subr.bf16.mxu0 0
    %987 = vmatpush1.bf16.msra.mxu0 0
    %988 = vmatprep.subr.bf16.mxu0 0
    %989 = vmatpush1.bf16.msra.mxu0 0
    %990 = vmatprep.subr.bf16.mxu0 0
    %991 = vmatpush1.bf16.msra.mxu0 0
    %992 = vmatprep.subr.bf16.mxu0 0
    %993 = vmatpush1.bf16.msra.mxu0 0
    %994 = vmatprep.subr.bf16.mxu0 0
    %995 = vmatpush1.bf16.msra.mxu0 0
    %996 = vmatprep.subr.bf16.mxu0 0
    %997 = vmatpush1.bf16.msra.mxu0 0
    %998 = vmatprep.subr.bf16.mxu0 0
    %999 = vmatpush1.bf16.msra.mxu0 0
    %1000 = vmatprep.subr.bf16.mxu0 0
    %1001 = vmatpush1.bf16.msra.mxu0 0
    %1002 = vmatprep.subr.bf16.mxu0 0
    %1003 = vmatpush1.bf16.msra.mxu0 0
    %1004 = vmatprep.subr.bf16.mxu0 0
    %1005 = vmatpush1.bf16.msra.mxu0 0
    %1006 = vmatprep.subr.bf16.mxu0 0
    %1007 = vmatpush1.bf16.msra.mxu0 0
    %1008 = vmatprep.subr.bf16.mxu0 0
    %1009 = vmatpush1.bf16.msra.mxu0 0
    %1010 = vmatprep.subr.bf16.mxu0 0
    %1011 = vmatpush1.bf16.msra.mxu0 0
    %1012 = vmatprep.subr.bf16.mxu0 0
    %1013 = vmatpush1.bf16.msra.mxu0 0
    %1014 = vmatprep.mubr.bf16.mxu0 0
    %1015 = vmatmul.mubr.bf16.gmra.mrb[0].mxu0 %v939
    %v1016 = vpop.f32.mrb[0].mxu0
    %v1017 = vadd.f32 0.0, %v1016
    %v1018 = vpop.f32.mrb[0].mxu0
    %v1019 = vpop.f32.mrb[0].mxu0
    %v1020 = vpop.f32.mrb[0].mxu0
    %1021 = vdwg.mxu0
    %v1022 = vmul.f32 %v934, %v976
    %v1023 = vmul.f32 %v935, %v978
    %v1024 = vmul.f32 %v936, %v1017
    %v1025 = vpack.c.bf16 %v1022, %v1022
    %v1026 = vpack.c.bf16 %v1023, %v1023
    %v1027 = vpack.c.bf16 %v1024, %v1024
    %v1029 = vsel %vm599, %v1027, 0
    %1031 = vmatprep.subr.bf16.mxu0 0
    %1032 = vmatpush1.bf16.msra.mxu0 %v566
    %1033 = vmatprep.subr.bf16.mxu0 0
    %1034 = vmatpush1.bf16.msra.mxu0 %v567
    %1035 = vmatprep.subr.bf16.mxu0 0
    %1036 = vmatpush1.bf16.msra.mxu0 %v568
    %1037 = vmatprep.subr.bf16.mxu0 0
    %1038 = vmatpush1.bf16.msra.mxu0 %v569
    %1039 = vmatprep.subr.bf16.mxu0 0
    %1040 = vmatpush1.bf16.msra.mxu0 %v570
    %1041 = vmatprep.subr.bf16.mxu0 0
    %1042 = vmatpush1.bf16.msra.mxu0 %v571
    %1043 = vmatprep.subr.bf16.mxu0 0
    %1044 = vmatpush1.bf16.msra.mxu0 %v572
    %1045 = vmatprep.subr.bf16.mxu0 0
    %1046 = vmatpush1.bf16.msra.mxu0 %v573
    %1047 = vmatprep.subr.bf16.mxu0 0
    %1048 = vmatpush1.bf16.msra.mxu0 %v574
    %1049 = vmatprep.subr.bf16.mxu0 0
    %1050 = vmatpush1.bf16.msra.mxu0 %v575
    %1051 = vmatprep.subr.bf16.mxu0 0
    %1052 = vmatpush1.bf16.msra.mxu0 %v576
    %1053 = vmatprep.subr.bf16.mxu0 0
    %1054 = vmatpush1.bf16.msra.mxu0 %v577
    %1055 = vmatprep.subr.bf16.mxu0 0
    %1056 = vmatpush1.bf16.msra.mxu0 %v578
    %1057 = vmatprep.subr.bf16.mxu0 0
    %1058 = vmatpush1.bf16.msra.mxu0 %v579
    %1059 = vmatprep.subr.bf16.mxu0 0
    %1060 = vmatpush1.bf16.msra.mxu0 %v580
    %1061 = vmatprep.subr.bf16.mxu0 0
    %1062 = vmatpush1.bf16.msra.mxu0 %v581
    %1063 = vmatprep.mubr.bf16.mxu0 %v1026
    %1064 = vmatmul.mubr.bf16.gmra.mrb[0].mxu0 %v1025
    %v1065 = vpop.f32.mrb[0].mxu0
    %v1066 = vadd.f32 0.0, %v1065
    %v1067 = vpop.f32.mrb[0].mxu0
    %v1068 = vpop.f32.mrb[0].mxu0
    %v1069 = vpop.f32.mrb[0].mxu0
    %1070 = vdwg.mxu0
    %1071 = vmatprep.subr.bf16.mxu0 0
    %1072 = vmatpush1.bf16.msra.mxu0 %v605
    %1073 = vmatprep.subr.bf16.mxu0 0
    %1074 = vmatpush1.bf16.msra.mxu0 0
    %1075 = vmatprep.subr.bf16.mxu0 0
    %1076 = vmatpush1.bf16.msra.mxu0 0
    %1077 = vmatprep.subr.bf16.mxu0 0
    %1078 = vmatpush1.bf16.msra.mxu0 0
    %1079 = vmatprep.subr.bf16.mxu0 0
    %1080 = vmatpush1.bf16.msra.mxu0 0
    %1081 = vmatprep.subr.bf16.mxu0 0
    %1082 = vmatpush1.bf16.msra.mxu0 0
    %1083 = vmatprep.subr.bf16.mxu0 0
    %1084 = vmatpush1.bf16.msra.mxu0 0
    %1085 = vmatprep.subr.bf16.mxu0 0
    %1086 = vmatpush1.bf16.msra.mxu0 0
    %1087 = vmatprep.subr.bf16.mxu0 0
    %1088 = vmatpush1.bf16.msra.mxu0 0
    %1089 = vmatprep.subr.bf16.mxu0 0
    %1090 = vmatpush1.bf16.msra.mxu0 0
    %1091 = vmatprep.subr.bf16.mxu0 0
    %1092 = vmatpush1.bf16.msra.mxu0 0
    %1093 = vmatprep.subr.bf16.mxu0 0
    %1094 = vmatpush1.bf16.msra.mxu0 0
    %1095 = vmatprep.subr.bf16.mxu0 0
    %1096 = vmatpush1.bf16.msra.mxu0 0
    %1097 = vmatprep.subr.bf16.mxu0 0
    %1098 = vmatpush1.bf16.msra.mxu0 0
    %1099 = vmatprep.subr.bf16.mxu0 0
    %1100 = vmatpush1.bf16.msra.mxu0 0
    %1101 = vmatprep.subr.bf16.mxu0 0
    %1102 = vmatpush1.bf16.msra.mxu0 0
    %1103 = vmatprep.mubr.bf16.mxu0 0
    %1104 = vmatmul.mubr.bf16.gmra.mrb[0].mxu0 %v1029
    %v1105 = vpop.f32.mrb[0].mxu0
    %v1106 = vadd.f32 %v1066, %v1105
    %v1107 = vpop.f32.mrb[0].mxu0
    %v1108 = vpop.f32.mrb[0].mxu0
    %v1109 = vpop.f32.mrb[0].mxu0
    %1110 = vdwg.mxu0
    %v1111 = vmul.f32 %v779, %v782
    %v1112 = vmul.f32 %v1111, %v797
    %1114 = vset.pattern.permute.xlu0 0
    %1115 = vperm.xlu0 %1114, %v1112
    %v1116 = vpop.permute.xlu0 %1115
    %v1118 = vmul.f32 %v1106, %v1116
    %v1119 = vadd.f32 %v682, %v1118
    %v1120 = vmul.f32 %v1119, %v687
    %1121 = vmatprep.subr.mxu0 0.0
    %1122 = vmatpush1.msra.mxu0 %v1120
    %1123 = vmatprep.subr.mxu0 0.0
    %1124 = vmatpush1.msra.mxu0 0.0
    %1125 = vmatprep.subr.mxu0 0.0
    %1126 = vmatpush1.msra.mxu0 0.0
    %1127 = vmatprep.subr.mxu0 0.0
    %1128 = vmatpush1.msra.mxu0 0.0
    %1129 = vmatprep.subr.mxu0 0.0
    %1130 = vmatpush1.msra.mxu0 0.0
    %1131 = vmatprep.subr.mxu0 0.0
    %1132 = vmatpush1.msra.mxu0 0.0
    %1133 = vmatprep.subr.mxu0 0.0
    %1134 = vmatpush1.msra.mxu0 0.0
    %1135 = vmatprep.subr.mxu0 0.0
    %1136 = vmatpush1.msra.mxu0 0.0
    %1137 = vmatprep.subr.mxu0 0.0
    %1138 = vmatpush1.msra.mxu0 0.0
    %1139 = vmatprep.subr.mxu0 0.0
    %1140 = vmatpush1.msra.mxu0 0.0
    %1141 = vmatprep.subr.mxu0 0.0
    %1142 = vmatpush1.msra.mxu0 0.0
    %1143 = vmatprep.subr.mxu0 0.0
    %1144 = vmatpush1.msra.mxu0 0.0
    %1145 = vmatprep.subr.mxu0 0.0
    %1146 = vmatpush1.msra.mxu0 0.0
    %1147 = vmatprep.subr.mxu0 0.0
    %1148 = vmatpush1.msra.mxu0 0.0
    %1149 = vmatprep.subr.mxu0 0.0
    %1150 = vmatpush1.msra.mxu0 0.0
    %1151 = vmatprep.subr.mxu0 0.0
    %1152 = vmatpush1.msra.mxu0 0.0
    %1153 = vmatprep.subr.mxu0 0.0
    %1154 = vmatpush1.msra.mxu0 0.0
    %1155 = vmatprep.subr.mxu0 0.0
    %1156 = vmatpush1.msra.mxu0 0.0
    %1157 = vmatprep.subr.mxu0 0.0
    %1158 = vmatpush1.msra.mxu0 0.0
    %1159 = vmatprep.subr.mxu0 0.0
    %1160 = vmatpush1.msra.mxu0 0.0
    %1161 = vmatprep.subr.mxu0 0.0
    %1162 = vmatpush1.msra.mxu0 0.0
    %1163 = vmatprep.subr.mxu0 0.0
    %1164 = vmatpush1.msra.mxu0 0.0
    %1165 = vmatprep.subr.mxu0 0.0
    %1166 = vmatpush1.msra.mxu0 0.0
    %1167 = vmatprep.subr.mxu0 0.0
    %1168 = vmatpush1.msra.mxu0 0.0
    %1169 = vmatprep.subr.mxu0 0.0
    %1170 = vmatpush1.msra.mxu0 0.0
    %1171 = vmatprep.subr.mxu0 0.0
    %1172 = vmatpush1.msra.mxu0 0.0
    %1173 = vmatprep.subr.mxu0 0.0
    %1174 = vmatpush1.msra.mxu0 0.0
    %1175 = vmatprep.subr.mxu0 0.0
    %1176 = vmatpush1.msra.mxu0 0.0
    %1177 = vmatprep.subr.mxu0 0.0
    %1178 = vmatpush1.msra.mxu0 0.0
    %1179 = vmatprep.subr.mxu0 0.0
    %1180 = vmatpush1.msra.mxu0 0.0
    %1181 = vmatprep.subr.mxu0 0.0
    %1182 = vmatpush1.msra.mxu0 0.0
    %1183 = vmatprep.subr.mxu0 0.0
    %1184 = vmatpush1.msra.mxu0 0.0
    %1185 = vmatprep.mubr.f32.mxu0 0.0
    %1186 = vmatmul.mubr.f32.gmra.mrb[0].mxu0 %v691
    %v1187 = vpop.f32.mrb[0].mxu0
    %v1188 = vadd.f32 0.0, %v1187
    %v1189 = vpop.f32.mrb[0].mxu0
    %1190 = vdwg.mxu0
    %v1191 = vsel %vm104, %v1188, 0.0
    %1192 = vadd.xlane.f32.xlu0 %v1191
    %v1193 = vpop.xlane.xlu0 %1192
    %v1194 = vadd.f32 %v1193, %v771
    %v1195 = vsub.f32 0.0, %v1194
    %v1196 = vmul.f32 %v1195, 1.442695
    %v1197 = vpow.pop %v1196
    %v1198 = vadd.f32 %v1197, 1.0
    %v1199 = vrcp.pop %v1198
    %v1200 = vmul.f32 1.0, %v1199
    %vm1201 = vcmp.gt.f32.partialorder %v1200, 0.5
    %v1202 = vsel %vm1201, 1, 0
    %v1203 = vcvt.s32.f32 %v1202
    %v1204 = vsub.f32 %v1200, %v779
    %v1205 = vmul.f32 %v797, %v1204
    %v1206 = vadd.f32 %v779, %v1205
    %v1207 = vsub.f32 %v1203, %v782
    %v1208 = vmul.f32 %v797, %v1207
    %v1209 = vadd.f32 %v782, %v1208
    %v1210 = vsel %vm783, %v1209, 0.0
    %1211 = vadd.xlane.f32.xlu0 %v1210
    %v1212 = vpop.xlane.xlu0 %1211
    %v1213 = vrot.slane %v1212, 4
    %v1214 = vadd.f32 %v1212, %v1213
    %v1215 = vrot.slane %v1214, 2
    %v1216 = vadd.f32 %v1214, %v1215
    %v1217 = vrot.slane %v1216, 1
    %v1218 = vadd.f32 %v1216, %v1217
    %s1219 = vtos %v1218
    %v1220 = vstv %s1219
    %vm1221 = vcmp.gt.f32.partialorder %v1220, 0.0
    %v1222 = vsel %vm1221, 1, 0
    %v1223 = vcvt.s32.f32 %v1222
    %v1224 = vpack.c.bf16 %v1119, %v1119
    %v1226 = vsel %vm104, %v1224, 0
    %1228 = vmatprep.subr.bf16.mxu0 0
    %1229 = vmatpush1.bf16.msra.mxu0 %v96
    %1230 = vmatprep.subr.bf16.mxu0 0
    %1231 = vmatpush1.bf16.msra.mxu0 %v97
    %1232 = vmatprep.subr.bf16.mxu0 0
    %1233 = vmatpush1.bf16.msra.mxu0 %v98
    %1234 = vmatprep.subr.bf16.mxu0 0
    %1235 = vmatpush1.bf16.msra.mxu0 %v99
    %1236 = vmatprep.subr.bf16.mxu0 0
    %1237 = vmatpush1.bf16.msra.mxu0 0
    %1238 = vmatprep.subr.bf16.mxu0 0
    %1239 = vmatpush1.bf16.msra.mxu0 0
    %1240 = vmatprep.subr.bf16.mxu0 0
    %1241 = vmatpush1.bf16.msra.mxu0 0
    %1242 = vmatprep.subr.bf16.mxu0 0
    %1243 = vmatpush1.bf16.msra.mxu0 0
    %1244 = vmatprep.subr.bf16.mxu0 0
    %1245 = vmatpush1.bf16.msra.mxu0 0
    %1246 = vmatprep.subr.bf16.mxu0 0
    %1247 = vmatpush1.bf16.msra.mxu0 0
    %1248 = vmatprep.subr.bf16.mxu0 0
    %1249 = vmatpush1.bf16.msra.mxu0 0
    %1250 = vmatprep.subr.bf16.mxu0 0
    %1251 = vmatpush1.bf16.msra.mxu0 0
    %1252 = vmatprep.subr.bf16.mxu0 0
    %1253 = vmatpush1.bf16.msra.mxu0 0
    %1254 = vmatprep.subr.bf16.mxu0 0
    %1255 = vmatpush1.bf16.msra.mxu0 0
    %1256 = vmatprep.subr.bf16.mxu0 0
    %1257 = vmatpush1.bf16.msra.mxu0 0
    %1258 = vmatprep.subr.bf16.mxu0 0
    %1259 = vmatpush1.bf16.msra.mxu0 0
    %1260 = vmatprep.mubr.bf16.mxu0 0
    %1261 = vmatmul.mubr.bf16.gmra.mrb[0].mxu0 %v1226
    %v1262 = vpop.f32.mrb[0].mxu0
    %v1263 = vadd.f32 %v78, %v1262
    %v1264 = vpop.f32.mrb[0].mxu0
    %v1265 = vpop.f32.mrb[0].mxu0
    %v1266 = vpop.f32.mrb[0].mxu0
    %1267 = vdwg.mxu0
    %v1268 = vsel %vm148, %v1263, -inf
    %1269 = vmax.xlane.f32.xlu0 %v1268
    %v1270 = vpop.xlane.xlu0 %1269
    %v1271 = vsub.f32 %v1263, %v1270
    %v1272 = vmul.f32 %v1271, 1.442695
    %v1273 = vpow.pop %v1272
    %v1274 = vsel %vm148, %v1273, 0.0
    %1275 = vadd.xlane.f32.xlu0 %v1274
    %v1276 = vpop.xlane.xlu0 %1275
    %v1277 = vrcp.pop %v1276
    %v1278 = vmul.f32 %v1273, %v1277
    %1279 = vmatprep.subr.bf16.mxu0 %v234
    %1280 = vmatpush1.bf16.msra.mxu0 %v233
    %1281 = vmatprep.subr.bf16.mxu0 %v237
    %1282 = vmatpush1.bf16.msra.mxu0 %v236
    %1283 = vmatprep.subr.bf16.mxu0 %v240
    %1284 = vmatpush1.bf16.msra.mxu0 %v239
    %1285 = vmatprep.subr.bf16.mxu0 %v243
    %1286 = vmatpush1.bf16.msra.mxu0 %v242
    %1287 = vmatprep.subr.bf16.mxu0 0
    %1288 = vmatpush1.bf16.msra.mxu0 0
    %1289 = vmatprep.subr.bf16.mxu0 0
    %1290 = vmatpush1.bf16.msra.mxu0 0
    %1291 = vmatprep.subr.bf16.mxu0 0
    %1292 = vmatpush1.bf16.msra.mxu0 0
    %1293 = vmatprep.subr.bf16.mxu0 0
    %1294 = vmatpush1.bf16.msra.mxu0 0
    %1295 = vmatprep.subr.bf16.mxu0 0
    %1296 = vmatpush1.bf16.msra.mxu0 0
    %1297 = vmatprep.subr.bf16.mxu0 0
    %1298 = vmatpush1.bf16.msra.mxu0 0
    %1299 = vmatprep.subr.bf16.mxu0 0
    %1300 = vmatpush1.bf16.msra.mxu0 0
    %1301 = vmatprep.subr.bf16.mxu0 0
    %1302 = vmatpush1.bf16.msra.mxu0 0
    %1303 = vmatprep.subr.bf16.mxu0 0
    %1304 = vmatpush1.bf16.msra.mxu0 0
    %1305 = vmatprep.subr.bf16.mxu0 0
    %1306 = vmatpush1.bf16.msra.mxu0 0
    %1307 = vmatprep.subr.bf16.mxu0 0
    %1308 = vmatpush1.bf16.msra.mxu0 0
    %1309 = vmatprep.subr.bf16.mxu0 0
    %1310 = vmatpush1.bf16.msra.mxu0 0
    %1311 = vmatprep.mubr.bf16.mxu0 0
    %1312 = vmatmul.mubr.bf16.gmra.mrb[0].mxu0 %v1226
    %v1313 = vpop.f32.mrb[0].mxu0
    %v1314 = vadd.f32 %v181, %v1313
    %v1315 = vpop.f32.mrb[0].mxu0
    %v1316 = vadd.f32 %v185, %v1315
    %v1317 = vpop.f32.mrb[0].mxu0
    %v1318 = vpop.f32.mrb[0].mxu0
    %1319 = vdwg.mxu0
    %1320 = vmatprep.subr.bf16.mxu0 0
    %1321 = vmatpush1.bf16.msra.mxu0 %v235
    %1322 = vmatprep.subr.bf16.mxu0 0
    %1323 = vmatpush1.bf16.msra.mxu0 %v238
    %1324 = vmatprep.subr.bf16.mxu0 0
    %1325 = vmatpush1.bf16.msra.mxu0 %v241
    %1326 = vmatprep.subr.bf16.mxu0 0
    %1327 = vmatpush1.bf16.msra.mxu0 %v244
    %1328 = vmatprep.subr.bf16.mxu0 0
    %1329 = vmatpush1.bf16.msra.mxu0 0
    %1330 = vmatprep.subr.bf16.mxu0 0
    %1331 = vmatpush1.bf16.msra.mxu0 0
    %1332 = vmatprep.subr.bf16.mxu0 0
    %1333 = vmatpush1.bf16.msra.mxu0 0
    %1334 = vmatprep.subr.bf16.mxu0 0
    %1335 = vmatpush1.bf16.msra.mxu0 0
    %1336 = vmatprep.subr.bf16.mxu0 0
    %1337 = vmatpush1.bf16.msra.mxu0 0
    %1338 = vmatprep.subr.bf16.mxu0 0
    %1339 = vmatpush1.bf16.msra.mxu0 0
    %1340 = vmatprep.subr.bf16.mxu0 0
    %1341 = vmatpush1.bf16.msra.mxu0 0
    %1342 = vmatprep.subr.bf16.mxu0 0
    %1343 = vmatpush1.bf16.msra.mxu0 0
    %1344 = vmatprep.subr.bf16.mxu0 0
    %1345 = vmatpush1.bf16.msra.mxu0 0
    %1346 = vmatprep.subr.bf16.mxu0 0
    %1347 = vmatpush1.bf16.msra.mxu0 0
    %1348 = vmatprep.subr.bf16.mxu0 0
    %1349 = vmatpush1.bf16.msra.mxu0 0
    %1350 = vmatprep.subr.bf16.mxu0 0
    %1351 = vmatpush1.bf16.msra.mxu0 0
    %1352 = vmatprep.mubr.bf16.mxu0 0
    %1353 = vmatmul.mubr.bf16.gmra.mrb[0].mxu0 %v1226
    %v1354 = vpop.f32.mrb[0].mxu0
    %v1355 = vadd.f32 %v189, %v1354
    %v1356 = vpop.f32.mrb[0].mxu0
    %v1357 = vpop.f32.mrb[0].mxu0
    %v1358 = vpop.f32.mrb[0].mxu0
    %1359 = vdwg.mxu0
    %v1360 = vmax.f32 %v1314, 0.0
    %v1361 = vmax.f32 %v1316, 0.0
    %v1362 = vmax.f32 %v1355, 0.0
    %v1363 = vpack.c.bf16 %v1278, %v1278
    %v1365 = vsel %vm148, %v1363, 0
    %1367 = vmatprep.subr.bf16.mxu0 %v368
    %1368 = vmatpush1.bf16.msra.mxu0 %v365
    %1369 = vmatprep.subr.bf16.mxu0 0
    %1370 = vmatpush1.bf16.msra.mxu0 0
    %1371 = vmatprep.subr.bf16.mxu0 0
    %1372 = vmatpush1.bf16.msra.mxu0 0
    %1373 = vmatprep.subr.bf16.mxu0 0
    %1374 = vmatpush1.bf16.msra.mxu0 0
    %1375 = vmatprep.subr.bf16.mxu0 0
    %1376 = vmatpush1.bf16.msra.mxu0 0
    %1377 = vmatprep.subr.bf16.mxu0 0
    %1378 = vmatpush1.bf16.msra.mxu0 0
    %1379 = vmatprep.subr.bf16.mxu0 0
    %1380 = vmatpush1.bf16.msra.mxu0 0
    %1381 = vmatprep.subr.bf16.mxu0 0
    %1382 = vmatpush1.bf16.msra.mxu0 0
    %1383 = vmatprep.subr.bf16.mxu0 0
    %1384 = vmatpush1.bf16.msra.mxu0 0
    %1385 = vmatprep.subr.bf16.mxu0 0
    %1386 = vmatpush1.bf16.msra.mxu0 0
    %1387 = vmatprep.subr.bf16.mxu0 0
    %1388 = vmatpush1.bf16.msra.mxu0 0
    %1389 = vmatprep.subr.bf16.mxu0 0
    %1390 = vmatpush1.bf16.msra.mxu0 0
    %1391 = vmatprep.subr.bf16.mxu0 0
    %1392 = vmatpush1.bf16.msra.mxu0 0
    %1393 = vmatprep.subr.bf16.mxu0 0
    %1394 = vmatpush1.bf16.msra.mxu0 0
    %1395 = vmatprep.subr.bf16.mxu0 0
    %1396 = vmatpush1.bf16.msra.mxu0 0
    %1397 = vmatprep.subr.bf16.mxu0 0
    %1398 = vmatpush1.bf16.msra.mxu0 0
    %1399 = vmatprep.mubr.bf16.mxu0 0
    %1400 = vmatmul.mubr.bf16.gmra.mrb[0].mxu0 %v1365
    %v1401 = vpop.f32.mrb[0].mxu0
    %v1402 = vadd.f32 0.0, %v1401
    %v1403 = vpop.f32.mrb[0].mxu0
    %v1404 = vadd.f32 0.0, %v1403
    %v1405 = vpop.f32.mrb[0].mxu0
    %v1406 = vpop.f32.mrb[0].mxu0
    %1407 = vdwg.mxu0
    %1408 = vmatprep.subr.bf16.mxu0 0
    %1409 = vmatpush1.bf16.msra.mxu0 %v371
    %1410 = vmatprep.subr.bf16.mxu0 0
    %1411 = vmatpush1.bf16.msra.mxu0 0
    %1412 = vmatprep.subr.bf16.mxu0 0
    %1413 = vmatpush1.bf16.msra.mxu0 0
    %1414 = vmatprep.subr.bf16.mxu0 0
    %1415 = vmatpush1.bf16.msra.mxu0 0
    %1416 = vmatprep.subr.bf16.mxu0 0
    %1417 = vmatpush1.bf16.msra.mxu0 0
    %1418 = vmatprep.subr.bf16.mxu0 0
    %1419 = vmatpush1.bf16.msra.mxu0 0
    %1420 = vmatprep.subr.bf16.mxu0 0
    %1421 = vmatpush1.bf16.msra.mxu0 0
    %1422 = vmatprep.subr.bf16.mxu0 0
    %1423 = vmatpush1.bf16.msra.mxu0 0
    %1424 = vmatprep.subr.bf16.mxu0 0
    %1425 = vmatpush1.bf16.msra.mxu0 0
    %1426 = vmatprep.subr.bf16.mxu0 0
    %1427 = vmatpush1.bf16.msra.mxu0 0
    %1428 = vmatprep.subr.bf16.mxu0 0
    %1429 = vmatpush1.bf16.msra.mxu0 0
    %1430 = vmatprep.subr.bf16.mxu0 0
    %1431 = vmatpush1.bf16.msra.mxu0 0
    %1432 = vmatprep.subr.bf16.mxu0 0
    %1433 = vmatpush1.bf16.msra.mxu0 0
    %1434 = vmatprep.subr.bf16.mxu0 0
    %1435 = vmatpush1.bf16.msra.mxu0 0
    %1436 = vmatprep.subr.bf16.mxu0 0
    %1437 = vmatpush1.bf16.msra.mxu0 0
    %1438 = vmatprep.subr.bf16.mxu0 0
    %1439 = vmatpush1.bf16.msra.mxu0 0
    %1440 = vmatprep.mubr.bf16.mxu0 0
    %1441 = vmatmul.mubr.bf16.gmra.mrb[0].mxu0 %v1365
    %v1442 = vpop.f32.mrb[0].mxu0
    %v1443 = vadd.f32 0.0, %v1442
    %v1444 = vpop.f32.mrb[0].mxu0
    %v1445 = vpop.f32.mrb[0].mxu0
    %v1446 = vpop.f32.mrb[0].mxu0
    %1447 = vdwg.mxu0
    %v1448 = vmul.f32 %v1360, %v1402
    %v1449 = vmul.f32 %v1361, %v1404
    %v1450 = vmul.f32 %v1362, %v1443
    %v1451 = vpack.c.bf16 %v1448, %v1448
    %v1452 = vpack.c.bf16 %v1449, %v1449
    %v1453 = vpack.c.bf16 %v1450, %v1450
    %v1455 = vsel %vm599, %v1453, 0
    %1457 = vmatprep.subr.bf16.mxu0 0
    %1458 = vmatpush1.bf16.msra.mxu0 %v566
    %1459 = vmatprep.subr.bf16.mxu0 0
    %1460 = vmatpush1.bf16.msra.mxu0 %v567
    %1461 = vmatprep.subr.bf16.mxu0 0
    %1462 = vmatpush1.bf16.msra.mxu0 %v568
    %1463 = vmatprep.subr.bf16.mxu0 0
    %1464 = vmatpush1.bf16.msra.mxu0 %v569
    %1465 = vmatprep.subr.bf16.mxu0 0
    %1466 = vmatpush1.bf16.msra.mxu0 %v570
    %1467 = vmatprep.subr.bf16.mxu0 0
    %1468 = vmatpush1.bf16.msra.mxu0 %v571
    %1469 = vmatprep.subr.bf16.mxu0 0
    %1470 = vmatpush1.bf16.msra.mxu0 %v572
    %1471 = vmatprep.subr.bf16.mxu0 0
    %1472 = vmatpush1.bf16.msra.mxu0 %v573
    %1473 = vmatprep.subr.bf16.mxu0 0
    %1474 = vmatpush1.bf16.msra.mxu0 %v574
    %1475 = vmatprep.subr.bf16.mxu0 0
    %1476 = vmatpush1.bf16.msra.mxu0 %v575
    %1477 = vmatprep.subr.bf16.mxu0 0
    %1478 = vmatpush1.bf16.msra.mxu0 %v576
    %1479 = vmatprep.subr.bf16.mxu0 0
    %1480 = vmatpush1.bf16.msra.mxu0 %v577
    %1481 = vmatprep.subr.bf16.mxu0 0
    %1482 = vmatpush1.bf16.msra.mxu0 %v578
    %1483 = vmatprep.subr.bf16.mxu0 0
    %1484 = vmatpush1.bf16.msra.mxu0 %v579
    %1485 = vmatprep.subr.bf16.mxu0 0
    %1486 = vmatpush1.bf16.msra.mxu0 %v580
    %1487 = vmatprep.subr.bf16.mxu0 0
    %1488 = vmatpush1.bf16.msra.mxu0 %v581
    %1489 = vmatprep.mubr.bf16.mxu0 %v1452
    %1490 = vmatmul.mubr.bf16.gmra.mrb[0].mxu0 %v1451
    %v1491 = vpop.f32.mrb[0].mxu0
    %v1492 = vadd.f32 0.0, %v1491
    %v1493 = vpop.f32.mrb[0].mxu0
    %v1494 = vpop.f32.mrb[0].mxu0
    %v1495 = vpop.f32.mrb[0].mxu0
    %1496 = vdwg.mxu0
    %1497 = vmatprep.subr.bf16.mxu0 0
    %1498 = vmatpush1.bf16.msra.mxu0 %v605
    %1499 = vmatprep.subr.bf16.mxu0 0
    %1500 = vmatpush1.bf16.msra.mxu0 0
    %1501 = vmatprep.subr.bf16.mxu0 0
    %1502 = vmatpush1.bf16.msra.mxu0 0
    %1503 = vmatprep.subr.bf16.mxu0 0
    %1504 = vmatpush1.bf16.msra.mxu0 0
    %1505 = vmatprep.subr.bf16.mxu0 0
    %1506 = vmatpush1.bf16.msra.mxu0 0
    %1507 = vmatprep.subr.bf16.mxu0 0
    %1508 = vmatpush1.bf16.msra.mxu0 0
    %1509 = vmatprep.subr.bf16.mxu0 0
    %1510 = vmatpush1.bf16.msra.mxu0 0
    %1511 = vmatprep.subr.bf16.mxu0 0
    %1512 = vmatpush1.bf16.msra.mxu0 0
    %1513 = vmatprep.subr.bf16.mxu0 0
    %1514 = vmatpush1.bf16.msra.mxu0 0
    %1515 = vmatprep.subr.bf16.mxu0 0
    %1516 = vmatpush1.bf16.msra.mxu0 0
    %1517 = vmatprep.subr.bf16.mxu0 0
    %1518 = vmatpush1.bf16.msra.mxu0 0
    %1519 = vmatprep.subr.bf16.mxu0 0
    %1520 = vmatpush1.bf16.msra.mxu0 0
    %1521 = vmatprep.subr.bf16.mxu0 0
    %1522 = vmatpush1.bf16.msra.mxu0 0
    %1523 = vmatprep.subr.bf16.mxu0 0
    %1524 = vmatpush1.bf16.msra.mxu0 0
    %1525 = vmatprep.subr.bf16.mxu0 0
    %1526 = vmatpush1.bf16.msra.mxu0 0
    %1527 = vmatprep.subr.bf16.mxu0 0
    %1528 = vmatpush1.bf16.msra.mxu0 0
    %1529 = vmatprep.mubr.bf16.mxu0 0
    %1530 = vmatmul.mubr.bf16.gmra.mrb[0].mxu0 %v1455
    %v1531 = vpop.f32.mrb[0].mxu0
    %v1532 = vadd.f32 %v1492, %v1531
    %v1533 = vpop.f32.mrb[0].mxu0
    %v1534 = vpop.f32.mrb[0].mxu0
    %v1535 = vpop.f32.mrb[0].mxu0
    %1536 = vdwg.mxu0
    %v1537 = vmul.f32 %v1206, %v1209
    %v1538 = vmul.f32 %v1537, %v1223
    %1540 = vset.pattern.permute.xlu0 0
    %1541 = vperm.xlu0 %1540, %v1538
    %v1542 = vpop.permute.xlu0 %1541
    %v1544 = vmul.f32 %v1532, %v1542
    %v1545 = vadd.f32 %v1119, %v1544
    %v1546 = vpack.c.bf16 %v1545, %v1545
    %v1547 = vld [vmem:[%s11] sm:$0xff]
    %v1548 = vld [vmem:[%s11 + $0x8] sm:$0xff]
    %v1549 = vld [vmem:[%s11 + $0x10] sm:$0xff]
    %v1550 = vld [vmem:[%s11 + $0x18] sm:$0xff]
    %v1551 = vld [vmem:[%s11 + $0x20] sm:$0xff]
    %v1552 = vld [vmem:[%s11 + $0x28] sm:$0xff]
    %v1553 = vld [vmem:[%s11 + $0x30] sm:$0xff]
    %v1554 = vld [vmem:[%s11 + $0x38] sm:$0xff]
    %v1563 = vunpack.c.l.b16 %v1547
    %v1564 = vunpack.c.h.b16 %v1547
    %v1565 = vunpack.c.l.b16 %v1548
    %v1566 = vunpack.c.h.b16 %v1548
    %v1567 = vunpack.c.l.b16 %v1549
    %v1568 = vunpack.c.h.b16 %v1549
    %v1569 = vunpack.c.l.b16 %v1550
    %v1570 = vunpack.c.h.b16 %v1550
    %v1571 = vunpack.c.l.b16 %v1551
    %v1572 = vunpack.c.h.b16 %v1551
    %v1573 = vunpack.c.l.b16 %v1552
    %v1574 = vunpack.c.h.b16 %v1552
    %v1575 = vunpack.c.l.b16 %v1553
    %v1576 = vunpack.c.h.b16 %v1553
    %v1577 = vunpack.c.l.b16 %v1554
    %v1578 = vunpack.c.h.b16 %v1554
    %v1579 = vpack.c.b16 %v1565, %v1563
    %v1580 = vpack.c.b16 %v1566, %v1564
    %v1581 = vpack.c.b16 %v1569, %v1567
    %v1582 = vpack.c.b16 %v1570, %v1568
    %v1583 = vpack.c.b16 %v1573, %v1571
    %v1584 = vpack.c.b16 %v1574, %v1572
    %v1585 = vpack.c.b16 %v1577, %v1575
    %v1586 = vpack.c.b16 %v1578, %v1576
    %v1596 = vsel %vm104, %v1546, 0
    %1598 = vmatprep.subr.bf16.mxu0 %v1580
    %1599 = vmatpush1.bf16.msra.mxu0 %v1579
    %1600 = vmatprep.subr.bf16.mxu0 %v1582
    %1601 = vmatpush1.bf16.msra.mxu0 %v1581
    %1602 = vmatprep.subr.bf16.mxu0 %v1584
    %1603 = vmatpush1.bf16.msra.mxu0 %v1583
    %1604 = vmatprep.subr.bf16.mxu0 %v1586
    %1605 = vmatpush1.bf16.msra.mxu0 %v1585
    %1606 = vmatprep.subr.bf16.mxu0 0
    %1607 = vmatpush1.bf16.msra.mxu0 0
    %1608 = vmatprep.subr.bf16.mxu0 0
    %1609 = vmatpush1.bf16.msra.mxu0 0
    %1610 = vmatprep.subr.bf16.mxu0 0
    %1611 = vmatpush1.bf16.msra.mxu0 0
    %1612 = vmatprep.subr.bf16.mxu0 0
    %1613 = vmatpush1.bf16.msra.mxu0 0
    %1614 = vmatprep.subr.bf16.mxu0 0
    %1615 = vmatpush1.bf16.msra.mxu0 0
    %1616 = vmatprep.subr.bf16.mxu0 0
    %1617 = vmatpush1.bf16.msra.mxu0 0
    %1618 = vmatprep.subr.bf16.mxu0 0
    %1619 = vmatpush1.bf16.msra.mxu0 0
    %1620 = vmatprep.subr.bf16.mxu0 0
    %1621 = vmatpush1.bf16.msra.mxu0 0
    %1622 = vmatprep.subr.bf16.mxu0 0
    %1623 = vmatpush1.bf16.msra.mxu0 0
    %1624 = vmatprep.subr.bf16.mxu0 0
    %1625 = vmatpush1.bf16.msra.mxu0 0
    %1626 = vmatprep.subr.bf16.mxu0 0
    %1627 = vmatpush1.bf16.msra.mxu0 0
    %1628 = vmatprep.subr.bf16.mxu0 0
    %1629 = vmatpush1.bf16.msra.mxu0 0
    %1630 = vmatprep.mubr.bf16.mxu0 0
    %1631 = vmatmul.mubr.bf16.gmra.mrb[0].mxu0 %v1596
    %v1632 = vpop.f32.mrb[0].mxu0
    %v1633 = vadd.f32 0.0, %v1632
    %v1634 = vpop.f32.mrb[0].mxu0
    %v1635 = vadd.f32 0.0, %v1634
    %v1636 = vpop.f32.mrb[0].mxu0
    %v1637 = vpop.f32.mrb[0].mxu0
    %1638 = vdwg.mxu0
    %v1639 = vld [vmem:[%s12] sm:$0xff]
    %v1640 = vld [vmem:[%s12 + $0x8] sm:$0xff]
    %v1641 = vmul.f32 %v1633, %v1639
    %v1642 = vmul.f32 %v1635, %v1640
    %v1643 = vld [vmem:[%s14] sm:$0x3]
    %v1645 = vsel %vm599, %v1643, 0
    %1647 = vmatprep.subr.mxu0 %v1642
    %1648 = vmatpush1.msra.mxu0 %v1641
    %1649 = vmatprep.subr.mxu0 0.0
    %1650 = vmatpush1.msra.mxu0 0.0
    %1651 = vmatprep.subr.mxu0 0.0
    %1652 = vmatpush1.msra.mxu0 0.0
    %1653 = vmatprep.subr.mxu0 0.0
    %1654 = vmatpush1.msra.mxu0 0.0
    %1655 = vmatprep.subr.mxu0 0.0
    %1656 = vmatpush1.msra.mxu0 0.0
    %1657 = vmatprep.subr.mxu0 0.0
    %1658 = vmatpush1.msra.mxu0 0.0
    %1659 = vmatprep.subr.mxu0 0.0
    %1660 = vmatpush1.msra.mxu0 0.0
    %1661 = vmatprep.subr.mxu0 0.0
    %1662 = vmatpush1.msra.mxu0 0.0
    %1663 = vmatprep.subr.mxu0 0.0
    %1664 = vmatpush1.msra.mxu0 0.0
    %1665 = vmatprep.subr.mxu0 0.0
    %1666 = vmatpush1.msra.mxu0 0.0
    %1667 = vmatprep.subr.mxu0 0.0
    %1668 = vmatpush1.msra.mxu0 0.0
    %1669 = vmatprep.subr.mxu0 0.0
    %1670 = vmatpush1.msra.mxu0 0.0
    %1671 = vmatprep.subr.mxu0 0.0
    %1672 = vmatpush1.msra.mxu0 0.0
    %1673 = vmatprep.subr.mxu0 0.0
    %1674 = vmatpush1.msra.mxu0 0.0
    %1675 = vmatprep.subr.mxu0 0.0
    %1676 = vmatpush1.msra.mxu0 0.0
    %1677 = vmatprep.subr.mxu0 0.0
    %1678 = vmatpush1.msra.mxu0 0.0
    %1679 = vmatprep.subr.mxu0 0.0
    %1680 = vmatpush1.msra.mxu0 0.0
    %1681 = vmatprep.subr.mxu0 0.0
    %1682 = vmatpush1.msra.mxu0 0.0
    %1683 = vmatprep.subr.mxu0 0.0
    %1684 = vmatpush1.msra.mxu0 0.0
    %1685 = vmatprep.subr.mxu0 0.0
    %1686 = vmatpush1.msra.mxu0 0.0
    %1687 = vmatprep.subr.mxu0 0.0
    %1688 = vmatpush1.msra.mxu0 0.0
    %1689 = vmatprep.subr.mxu0 0.0
    %1690 = vmatpush1.msra.mxu0 0.0
    %1691 = vmatprep.subr.mxu0 0.0
    %1692 = vmatpush1.msra.mxu0 0.0
    %1693 = vmatprep.subr.mxu0 0.0
    %1694 = vmatpush1.msra.mxu0 0.0
    %1695 = vmatprep.subr.mxu0 0.0
    %1696 = vmatpush1.msra.mxu0 0.0
    %1697 = vmatprep.subr.mxu0 0.0
    %1698 = vmatpush1.msra.mxu0 0.0
    %1699 = vmatprep.subr.mxu0 0.0
    %1700 = vmatpush1.msra.mxu0 0.0
    %1701 = vmatprep.subr.mxu0 0.0
    %1702 = vmatpush1.msra.mxu0 0.0
    %1703 = vmatprep.subr.mxu0 0.0
    %1704 = vmatpush1.msra.mxu0 0.0
    %1705 = vmatprep.subr.mxu0 0.0
    %1706 = vmatpush1.msra.mxu0 0.0
    %1707 = vmatprep.subr.mxu0 0.0
    %1708 = vmatpush1.msra.mxu0 0.0
    %1709 = vmatprep.subr.mxu0 0.0
    %1710 = vmatpush1.msra.mxu0 0.0
    %1711 = vmatprep.mubr.f32.mxu0 0.0
    %1712 = vmatmul.mubr.f32.gmra.mrb[0].mxu0 %v1645
    %v1713 = vpop.f32.mrb[0].mxu0
    %v1714 = vadd.f32 0.0, %v1713
    %v1715 = vpop.f32.mrb[0].mxu0
    %v1716 = vadd.f32 0.0, %v1715
    %1717 = vdwg.mxu0
    %v1718 = vld [vmem:[%s13] sm:$0xff]
    %v1719 = vld [vmem:[%s13 + $0x8] sm:$0xff]
    %v1720 = vld [vmem:[%s13 + $0x10] sm:$0xff]
    %v1721 = vld [vmem:[%s13 + $0x18] sm:$0xff]
    %v1722 = vld [vmem:[%s13 + $0x20] sm:$0xff]
    %v1723 = vld [vmem:[%s13 + $0x28] sm:$0xff]
    %v1724 = vld [vmem:[%s13 + $0x30] sm:$0xff]
    %v1725 = vld [vmem:[%s13 + $0x38] sm:$0xff]
    %v1726 = vld [vmem:[%s13 + $0x40] sm:$0xff]
    %v1727 = vld [vmem:[%s13 + $0x48] sm:$0xff]
    %v1728 = vld [vmem:[%s13 + $0x50] sm:$0xff]
    %v1729 = vld [vmem:[%s13 + $0x58] sm:$0xff]
    %v1730 = vld [vmem:[%s13 + $0x60] sm:$0xff]
    %v1731 = vld [vmem:[%s13 + $0x68] sm:$0xff]
    %v1732 = vld [vmem:[%s13 + $0x70] sm:$0xff]
    %v1733 = vld [vmem:[%s13 + $0x78] sm:$0xff]
    %v1734 = vld [vmem:[%s13 + $0x80] sm:$0xff]
    %v1735 = vld [vmem:[%s13 + $0x88] sm:$0xff]
    %v1736 = vld [vmem:[%s13 + $0x90] sm:$0xff]
    %v1737 = vld [vmem:[%s13 + $0x98] sm:$0xff]
    %v1738 = vld [vmem:[%s13 + $0xa0] sm:$0xff]
    %v1739 = vld [vmem:[%s13 + $0xa8] sm:$0xff]
    %v1740 = vld [vmem:[%s13 + $0xb0] sm:$0xff]
    %v1741 = vld [vmem:[%s13 + $0xb8] sm:$0xff]
    %v1742 = vld [vmem:[%s13 + $0xc0] sm:$0xff]
    %v1743 = vld [vmem:[%s13 + $0xc8] sm:$0xff]
    %v1744 = vld [vmem:[%s13 + $0xd0] sm:$0xff]
    %v1745 = vld [vmem:[%s13 + $0xd8] sm:$0xff]
    %v1746 = vld [vmem:[%s13 + $0xe0] sm:$0xff]
    %v1747 = vld [vmem:[%s13 + $0xe8] sm:$0xff]
    %v1748 = vld [vmem:[%s13 + $0xf0] sm:$0xff]
    %v1749 = vld [vmem:[%s13 + $0xf8] sm:$0xff]
    %v1750 = vld [vmem:[%s15] sm:$0x1]
    %v1752 = vlaneseq
    %v1753 = vshrl.u32 %v1752, 7
    %v1754 = vsub.s32 0, %v1753
    %v1755 = vrot.slane %v1750, %v1754
    %1757 = vmatprep.subr.mxu0 0.0
    %1758 = vmatpush1.msra.mxu0 %v1718
    %1759 = vmatprep.subr.mxu0 0.0
    %1760 = vmatpush1.msra.mxu0 %v1719
    %1761 = vmatprep.subr.mxu0 0.0
    %1762 = vmatpush1.msra.mxu0 %v1720
    %1763 = vmatprep.subr.mxu0 0.0
    %1764 = vmatpush1.msra.mxu0 %v1721
    %1765 = vmatprep.subr.mxu0 0.0
    %1766 = vmatpush1.msra.mxu0 %v1722
    %1767 = vmatprep.subr.mxu0 0.0
    %1768 = vmatpush1.msra.mxu0 %v1723
    %1769 = vmatprep.subr.mxu0 0.0
    %1770 = vmatpush1.msra.mxu0 %v1724
    %1771 = vmatprep.subr.mxu0 0.0
    %1772 = vmatpush1.msra.mxu0 %v1725
    %1773 = vmatprep.subr.mxu0 0.0
    %1774 = vmatpush1.msra.mxu0 %v1726
    %1775 = vmatprep.subr.mxu0 0.0
    %1776 = vmatpush1.msra.mxu0 %v1727
    %1777 = vmatprep.subr.mxu0 0.0
    %1778 = vmatpush1.msra.mxu0 %v1728
    %1779 = vmatprep.subr.mxu0 0.0
    %1780 = vmatpush1.msra.mxu0 %v1729
    %1781 = vmatprep.subr.mxu0 0.0
    %1782 = vmatpush1.msra.mxu0 %v1730
    %1783 = vmatprep.subr.mxu0 0.0
    %1784 = vmatpush1.msra.mxu0 %v1731
    %1785 = vmatprep.subr.mxu0 0.0
    %1786 = vmatpush1.msra.mxu0 %v1732
    %1787 = vmatprep.subr.mxu0 0.0
    %1788 = vmatpush1.msra.mxu0 %v1733
    %1789 = vmatprep.subr.mxu0 0.0
    %1790 = vmatpush1.msra.mxu0 %v1734
    %1791 = vmatprep.subr.mxu0 0.0
    %1792 = vmatpush1.msra.mxu0 %v1735
    %1793 = vmatprep.subr.mxu0 0.0
    %1794 = vmatpush1.msra.mxu0 %v1736
    %1795 = vmatprep.subr.mxu0 0.0
    %1796 = vmatpush1.msra.mxu0 %v1737
    %1797 = vmatprep.subr.mxu0 0.0
    %1798 = vmatpush1.msra.mxu0 %v1738
    %1799 = vmatprep.subr.mxu0 0.0
    %1800 = vmatpush1.msra.mxu0 %v1739
    %1801 = vmatprep.subr.mxu0 0.0
    %1802 = vmatpush1.msra.mxu0 %v1740
    %1803 = vmatprep.subr.mxu0 0.0
    %1804 = vmatpush1.msra.mxu0 %v1741
    %1805 = vmatprep.subr.mxu0 0.0
    %1806 = vmatpush1.msra.mxu0 %v1742
    %1807 = vmatprep.subr.mxu0 0.0
    %1808 = vmatpush1.msra.mxu0 %v1743
    %1809 = vmatprep.subr.mxu0 0.0
    %1810 = vmatpush1.msra.mxu0 %v1744
    %1811 = vmatprep.subr.mxu0 0.0
    %1812 = vmatpush1.msra.mxu0 %v1745
    %1813 = vmatprep.subr.mxu0 0.0
    %1814 = vmatpush1.msra.mxu0 %v1746
    %1815 = vmatprep.subr.mxu0 0.0
    %1816 = vmatpush1.msra.mxu0 %v1747
    %1817 = vmatprep.subr.mxu0 0.0
    %1818 = vmatpush1.msra.mxu0 %v1748
    %1819 = vmatprep.subr.mxu0 0.0
    %1820 = vmatpush1.msra.mxu0 %v1749
    %1821 = vmatprep.mubr.f32.mxu0 %v1716
    %1822 = vmatmul.mubr.f32.gmra.mrb[0].mxu0 %v1714
    %v1823 = vpop.f32.mrb[0].mxu0
    %v1824 = vadd.f32 %v1755, %v1823
    %v1825 = vpop.f32.mrb[0].mxu0
    %1826 = vdwg.mxu0
    %v1827 = vmax.f32 %v1824, 0.0
    %v1828 = vpack.c.bf16 %v1827, %v1827
    %v1829 = vld [vmem:[%s16] sm:$0xf]
    %v1830 = vld [vmem:[%s16 + $0x4] sm:$0xf]
    %v1831 = vld [vmem:[%s16 + $0x8] sm:$0xf]
    %v1832 = vld [vmem:[%s16 + $0xc] sm:$0xf]
    %v1833 = vld [vmem:[%s16 + $0x10] sm:$0xf]
    %v1834 = vld [vmem:[%s16 + $0x14] sm:$0xf]
    %v1835 = vld [vmem:[%s16 + $0x18] sm:$0xf]
    %v1836 = vld [vmem:[%s16 + $0x1c] sm:$0xf]
    %v1837 = vld [vmem:[%s17] sm:$0x1]
    %v1839 = vlaneseq
    %v1840 = vshrl.u32 %v1839, 7
    %v1841 = vsub.s32 0, %v1840
    %v1842 = vrot.slane %v1837, %v1841
    %v1852 = vunpack.c.l.b16 %v1829
    %v1853 = vunpack.c.l.b16 %v1830
    %v1854 = vunpack.c.l.b16 %v1831
    %v1855 = vunpack.c.l.b16 %v1832
    %v1856 = vunpack.c.l.b16 %v1833
    %v1857 = vunpack.c.l.b16 %v1834
    %v1858 = vunpack.c.l.b16 %v1835
    %v1859 = vunpack.c.l.b16 %v1836
    %v1860 = vpack.c.b16 %v1853, %v1852
    %v1861 = vpack.c.b16 %v1855, %v1854
    %v1862 = vpack.c.b16 %v1857, %v1856
    %v1863 = vpack.c.b16 %v1859, %v1858
    %v1869 = vsel %vm104, %v1828, 0
    %1871 = vmatprep.subr.bf16.mxu0 0
    %1872 = vmatpush1.bf16.msra.mxu0 %v1860
    %1873 = vmatprep.subr.bf16.mxu0 0
    %1874 = vmatpush1.bf16.msra.mxu0 %v1861
    %1875 = vmatprep.subr.bf16.mxu0 0
    %1876 = vmatpush1.bf16.msra.mxu0 %v1862
    %1877 = vmatprep.subr.bf16.mxu0 0
    %1878 = vmatpush1.bf16.msra.mxu0 %v1863
    %1879 = vmatprep.subr.bf16.mxu0 0
    %1880 = vmatpush1.bf16.msra.mxu0 0
    %1881 = vmatprep.subr.bf16.mxu0 0
    %1882 = vmatpush1.bf16.msra.mxu0 0
    %1883 = vmatprep.subr.bf16.mxu0 0
    %1884 = vmatpush1.bf16.msra.mxu0 0
    %1885 = vmatprep.subr.bf16.mxu0 0
    %1886 = vmatpush1.bf16.msra.mxu0 0
    %1887 = vmatprep.subr.bf16.mxu0 0
    %1888 = vmatpush1.bf16.msra.mxu0 0
    %1889 = vmatprep.subr.bf16.mxu0 0
    %1890 = vmatpush1.bf16.msra.mxu0 0
    %1891 = vmatprep.subr.bf16.mxu0 0
    %1892 = vmatpush1.bf16.msra.mxu0 0
    %1893 = vmatprep.subr.bf16.mxu0 0
    %1894 = vmatpush1.bf16.msra.mxu0 0
    %1895 = vmatprep.subr.bf16.mxu0 0
    %1896 = vmatpush1.bf16.msra.mxu0 0
    %1897 = vmatprep.subr.bf16.mxu0 0
    %1898 = vmatpush1.bf16.msra.mxu0 0
    %1899 = vmatprep.subr.bf16.mxu0 0
    %1900 = vmatpush1.bf16.msra.mxu0 0
    %1901 = vmatprep.subr.bf16.mxu0 0
    %1902 = vmatpush1.bf16.msra.mxu0 0
    %1903 = vmatprep.mubr.bf16.mxu0 0
    %1904 = vmatmul.mubr.bf16.gmra.mrb[0].mxu0 %v1869
    %v1905 = vpop.f32.mrb[0].mxu0
    %v1906 = vadd.f32 %v1842, %v1905
    %v1907 = vpop.f32.mrb[0].mxu0
    %v1908 = vpop.f32.mrb[0].mxu0
    %v1909 = vpop.f32.mrb[0].mxu0
    %1910 = vdwg.mxu0
    %vm1911 = vcmask 58368
    %1912 = vst.msk [vmem:[#allocation3] sm:$0x3] %vm1911, %v1906
    // Predicated region
    $region74: #{mixture_of_experts_forward.1} parent=1 // pred_check
      _
    $region75: #{mixture_of_experts_forward.1} parent=1 // pred_check_branch
      %1914 = sbr.rel (0) target = $region77
    $region76: #{mixture_of_experts_forward.1} parent=1 // pred_region
      %s1916 = ssub.s32 32, 32
      %1917 = vsyncadd [#allocation4], %s1916
      %s1919 = sshll.u32 [#allocation3], 4
      %s1920 = int_to_ptr.vmem [resolvable:$true] %s1919
      %1922 = dma.vmem_to_hbm [thread:$0]  %s1920, 32, %s18, [#allocation4]
    $region77: #{mixture_of_experts_forward.1} parent=1 // pred_fallthru
      _
    // Predicated region
    $region78: #{mixture_of_experts_forward.1} parent=1 // pred_check
      _
    $region79: #{mixture_of_experts_forward.1} parent=1 // pred_check_branch
      %1924 = sbr.rel (0) target = $region81
    $region80: #{mixture_of_experts_forward.1} parent=1 // pred_region
      %1925 = dma.done [#allocation4], 32
    $region81: #{mixture_of_experts_forward.1} parent=1 // pred_fallthru
      _
    %1926 = vsyncpa [#allocation4], 1

</llo_original>
